<compile_context>
chip_gen: v7x
topology: tpu7x:2x2x1
jax: 0.10.0
libtpu: 0.0.40
codegen_flags: <defaults>
</compile_context>

<pallas_src>
import jax
import jax.numpy as jnp
from jax.experimental import pallas as pl
from jax.experimental.pallas import tpu as pltpu

# Fixed-point config (argparse in the original; fixed here).
APREC = 8     # args.aprec  -> fractional bits for quant()
IWIDTH = 8    # args.iwidth -> integer bits for roundmax()

H = W = 32    # forward() hardcodes a 32x32 frequency plane (CIFAR images)
C = 3         # real RGB channels
CP = 4        # channels padded to 4  -> one batch = 4*32 = 128 lanes
GB = 4        # batches per grid step -> 16 planes = 512 input lanes, 128 output lanes
PG = GB * CP  # planes per group
LG = PG * W   # lanes per group (512)

# MXU operand dtype.  bf16 is the native MXU path on v6e/v7x and well within
# the tolerance gate below; set to jnp.float32 for bit-closer (slower) matmuls.
MXU_DTYPE = jnp.bfloat16


def _cnn_freq_kernel(xs_ref, fs_ref, frfi_ref, ssum_ref, pfw_ref,
                     tmp_ref, pfp_ref):
    """One 4-batch (16-plane, 512-lane) group of the forward hot path.

    xs_ref   : (32, 512)       f32   lane-dense input slab (plane p=b*CP+c at cols p*32..)
    fs_ref   : (64, 32)        bf16  stacked DFT matrix [Fr; Fi]            (constant)
    frfi_ref : (512, 1024)     bf16  [blockdiag(Fr) | blockdiag(Fi)]        (constant)
    ssum_ref : (512, 128)      bf16  per-batch channel-sum matrix           (constant)
    pfw_ref  : (32, 128)       f32   (+1 low / -1 high) mask, nonzero only for batch 0
    tmp_ref  : (32, 128)       f32   out: |channel-summed FFT magnitude| for this group
    pfp_ref  : (8, 128)        f32   out: PFSUM partial, broadcast over the block
    """
    x = xs_ref[...]                                              # (32, 512) f32

    # --- quant(): exact power-of-two multiplies (no division) ----------------
    x = jnp.round(x * jnp.float32(2.0 ** APREC)) * jnp.float32(2.0 ** (-APREC))

    # --- roundmax(): the 3-ReLU sequence == clip(x, -2^iwidth, 2^iwidth-1) ---
    x = jnp.clip(x,
                 jnp.float32(-(2.0 ** IWIDTH)),
                 jnp.float32(2.0 ** IWIDTH - 1.0))

    mxu_dt = fs_ref.dtype

    # --- 2-D DFT of all planes in the group: 2 batched MXU matmuls -----------
    # Left factor for every plane at once: A = [Fr; Fi] @ X_group
    a = jnp.dot(fs_ref[...], x.astype(mxu_dt),
                preferred_element_type=jnp.float32)              # (64, 512)
    # Fused right factor: [G | H] = A @ [blockdiag(Fr) | blockdiag(Fi)]
    gh = jnp.dot(a.astype(mxu_dt), frfi_ref[...],
                 preferred_element_type=jnp.float32)             # (64, 1024)
    g = gh[:, :LG]                                               # A @ BD(Fr)
    hm = gh[:, LG:]                                              # A @ BD(Fi)
    re = g[:H, :] - hm[H:, :]        # Fr@X@Fr - Fi@X@Fi   (8/128-aligned slices)
    im = hm[:H, :] + g[H:, :]        # Fr@X@Fi + Fi@X@Fr
    mag = jnp.sqrt(re * re + im * im)                            # (32, 512) f32

    # --- channel sum per batch (one MXU matmul; zero-padded channel adds 0) --
    tmp = jnp.abs(jnp.dot(mag.astype(mxu_dt), ssum_ref[...],
                          preferred_element_type=jnp.float32))   # (32, 128)
    tmp_ref[...] = tmp

    # --- PFSUM partial: (+1/-1)-weighted reduce; nonzero only for group 0 ----
    pf = jnp.sum(tmp * pfw_ref[...], keepdims=True)              # (1, 1)
    pfp_ref[...] = jnp.broadcast_to(pf, (8, 128)).astype(jnp.float32)


def make_constants():
    """Fixed-size (batch-independent) DFT / summation constants + freq mask."""
    k = jnp.arange(H, dtype=jnp.float32)
    ang = -2.0 * jnp.pi * jnp.outer(k, k) / jnp.float32(H)
    fr = jnp.cos(ang)
    fi = jnp.sin(ang)

    fs = jnp.concatenate([fr, fi], axis=0)                       # (64, 32)

    eye_pg = jnp.eye(PG, dtype=jnp.float32)
    frfi = jnp.concatenate([jnp.kron(eye_pg, fr),
                            jnp.kron(eye_pg, fi)], axis=1)       # (512, 1024)

    # plane p = b*CP + c row block -> batch-b column block (sums the channels)
    ssum = jnp.kron(jnp.kron(jnp.eye(GB, dtype=jnp.float32),
                             jnp.ones((CP, 1), jnp.float32)),
                    jnp.eye(W, dtype=jnp.float32))               # (512, 128)

    i = jnp.arange(H)[:, None]
    j = jnp.arange(W)[None, :]
    low = (i + j < 11) | (i - j > 21) | (j - i > 21) | (i + j > 52)
    mask_pm1 = 2.0 * low.astype(jnp.float32) - 1.0               # +1 low, -1 high

    return (fs.astype(MXU_DTYPE), frfi.astype(MXU_DTYPE),
            ssum.astype(MXU_DTYPE), mask_pm1)


@jax.jit
def cnn_forward(x, fs, frfi, ssum, mask_pm1):
    b, c, h, w = x.shape
    assert (c, h, w) == (C, H, W)

    bp = ((b + GB - 1) // GB) * GB        # batches padded to a multiple of GB
    ng = bp // GB                         # number of plane groups (grid size)

    # Zero-pad channels 3->CP and batches b->bp; padded planes FFT to zero.
    xp = jnp.zeros((bp, CP, h, w), jnp.float32).at[:b, :c].set(
        x.astype(jnp.float32))
    # Lane-dense slab: plane p = b*CP + c occupies columns [p*32 : (p+1)*32].
    xs = xp.transpose(2, 0, 1, 3).reshape(h, bp * CP * w)        # (32, bp*CP*32)

    # +1/-1 mask lives only in the batch-0 columns; zero for all other batches.
    pfw = jnp.zeros((h, bp * w), jnp.float32).at[:, :w].set(mask_pm1)

    itemsize = jnp.dtype(MXU_DTYPE).itemsize
    flops_per_group = (2 * 64 * W * LG            # A = Fs @ X
                       + 2 * 64 * LG * (2 * LG)   # [G|H] = A @ [BD(Fr)|BD(Fi)]
                       + 2 * H * LG * (GB * W))   # channel-sum matmul
    bytes_accessed = (xs.size * 4
                      + fs.size * itemsize + frfi.size * itemsize
                      + ssum.size * itemsize
                      + pfw.size * 4
                      + h * bp * w * 4            # tmp slab out
                      + 8 * ng * 128 * 4)         # PFSUM partials out

    tmp_slab, pfp = pl.pallas_call(
        _cnn_freq_kernel,
        out_shape=(
            jax.ShapeDtypeStruct((h, bp * w), jnp.float32),      # tmp slab
            jax.ShapeDtypeStruct((8 * ng, 128), jnp.float32),    # PFSUM partials
        ),
        grid_spec=pltpu.PrefetchScalarGridSpec(
            num_scalar_prefetch=0,
            grid=(ng,),
            in_specs=[
                pl.BlockSpec((h, LG), lambda g: (0, g)),          # x group slab
                pl.BlockSpec((2 * H, W), lambda g: (0, 0)),       # fs      (const)
                pl.BlockSpec((LG, 2 * LG), lambda g: (0, 0)),     # frfi    (const)
                pl.BlockSpec((LG, GB * W), lambda g: (0, 0)),     # ssum    (const)
                pl.BlockSpec((h, GB * w), lambda g: (0, g)),      # pfw group slice
            ],
            out_specs=(
                pl.BlockSpec((h, GB * w), lambda g: (0, g)),      # tmp group block
                pl.BlockSpec((8, 128), lambda g: (g, 0)),         # PFSUM partial
            ),
        ),
        compiler_params=pltpu.CompilerParams(
            dimension_semantics=("parallel",),     # v7x: split groups over 2 TCs
            vmem_limit_bytes=32 * 1024 * 1024,
        ),
        cost_estimate=pl.CostEstimate(
            flops=flops_per_group * ng,
            transcendentals=H * LG * ng,           # sqrt per magnitude element
            bytes_accessed=int(bytes_accessed),
        ),
    )(xs, fs, frfi, ssum, pfw)

    tmp = tmp_slab[:, :b * w].reshape(h, b, w).transpose(1, 0, 2)   # (B, 32, 32)
    pfsum = pfp[0, 0]     # batch 0 always lives in group 0; other groups are 0
    return tmp, pfsum


def reference_forward(x, mask_pm1):
    """Pure-JAX f32 reference (same DFT formulation), for a sanity check."""
    xq = jnp.round(x * jnp.float32(2.0 ** APREC)) * jnp.float32(2.0 ** (-APREC))
    xq = jnp.clip(xq, -(2.0 ** IWIDTH), 2.0 ** IWIDTH - 1.0)
    k = jnp.arange(H, dtype=jnp.float32)
    ang = -2.0 * jnp.pi * jnp.outer(k, k) / jnp.float32(H)
    fr, fi = jnp.cos(ang), jnp.sin(ang)
    ar = jnp.einsum('ik,bckl->bcil', fr, xq)
    ai = jnp.einsum('ik,bckl->bcil', fi, xq)
    re = jnp.einsum('bcil,lj->bcij', ar, fr) - jnp.einsum('bcil,lj->bcij', ai, fi)
    im = jnp.einsum('bcil,lj->bcij', ar, fi) + jnp.einsum('bcil,lj->bcij', ai, fr)
    mag = jnp.sqrt(re * re + im * im)
    tmp = jnp.abs(jnp.sum(mag, axis=1))                          # (B, 32, 32)
    pfsum = jnp.sum(jnp.abs(tmp[0]) * mask_pm1)
    return tmp, pfsum


if __name__ == "__main__":
    BATCH = 2
    key = jax.random.PRNGKey(0)

    # NCHW input; forward() hardcodes 3 channels and a 32x32 frequency plane.
    x = 2.0 * jax.random.normal(key, (BATCH, C, H, W), jnp.float32)

    fs, frfi, ssum, mask_pm1 = make_constants()

    tmp_map, pfsum = cnn_forward(x, fs, frfi, ssum, mask_pm1)
    jax.block_until_ready((tmp_map, pfsum))

    # Tolerance gate vs the pure-f32 reference (bf16 MXU operands + accumulation
    # order differences only; measured error is ~1% of scale, gate is 10%).
    ref_tmp, ref_pf = reference_forward(x, mask_pm1)
    scale = float(jnp.max(jnp.abs(ref_tmp))) + 1e-6
    max_err = float(jnp.max(jnp.abs(tmp_map - ref_tmp)))
    assert max_err < 1e-1 * scale, f"tmp mismatch: {max_err} vs scale {scale}"
    pf_denom = float(jnp.sum(jnp.abs(ref_tmp[0]))) + 1e-6
    assert abs(float(pfsum) - float(ref_pf)) < 1e-1 * pf_denom, \
        f"PFSUM mismatch: {float(pfsum)} vs {float(ref_pf)}"

    print("KERNEL_OK")
</pallas_src>

<mosaic_0001>
module attributes {stable_mosaic.version = 11 : i64} {
  func.func @_cnn_freq_kernel(%arg0: i32, %arg1: memref<32x512xf32, #tpu.memory_space<vmem>>, %arg2: memref<64x32xbf16, #tpu.memory_space<vmem>>, %arg3: memref<512x1024xbf16, #tpu.memory_space<vmem>>, %arg4: memref<512x128xbf16, #tpu.memory_space<vmem>>, %arg5: memref<32x128xf32, #tpu.memory_space<vmem>>, %arg6: memref<32x128xf32, #tpu.memory_space<vmem>>, %arg7: memref<8x128xf32, #tpu.memory_space<vmem>>) attributes {dimension_semantics = [#tpu.dimension_semantics<parallel>], iteration_bounds = array<i64: 1>, scalar_prefetch = 0 : i64, scratch_operands = 0 : i64, tpu.core_type = #tpu.core_type<tc>, window_params = [{transform_indices = @transform_0, window_bounds = array<i64: 32, 512>}, {pipeline_mode = #tpu.pipeline_mode<synchronous>, transform_indices = @transform_1, window_bounds = array<i64: 64, 32>}, {pipeline_mode = #tpu.pipeline_mode<synchronous>, transform_indices = @transform_2, window_bounds = array<i64: 512, 1024>}, {pipeline_mode = #tpu.pipeline_mode<synchronous>, transform_indices = @transform_3, window_bounds = array<i64: 512, 128>}, {transform_indices = @transform_4, window_bounds = array<i64: 32, 128>}, {transform_indices = @transform_5, window_bounds = array<i64: 32, 128>}, {transform_indices = @transform_6, window_bounds = array<i64: 8, 128>}]} {
    %c0 = arith.constant 0 : index
    %c0_0 = arith.constant 0 : index
    %0 = vector.load %arg1[%c0, %c0_0] : memref<32x512xf32, #tpu.memory_space<vmem>>, vector<32x512xf32>
    %cst = arith.constant 2.560000e+02 : f32
    %1 = vector.broadcast %cst : f32 to vector<32x512xf32>
    %2 = arith.mulf %0, %1 : vector<32x512xf32>
    %3 = math.roundeven %2 : vector<32x512xf32>
    %cst_1 = arith.constant 3.906250e-03 : f32
    %4 = vector.broadcast %cst_1 : f32 to vector<32x512xf32>
    %5 = arith.mulf %3, %4 : vector<32x512xf32>
    %cst_2 = arith.constant -2.560000e+02 : f32
    %cst_3 = arith.constant 2.550000e+02 : f32
    %6 = vector.broadcast %cst_2 : f32 to vector<32x512xf32>
    %7 = arith.maximumf %6, %5 : vector<32x512xf32>
    %8 = vector.broadcast %cst_3 : f32 to vector<32x512xf32>
    %9 = arith.minimumf %8, %7 : vector<32x512xf32>
    %c0_4 = arith.constant 0 : index
    %c0_5 = arith.constant 0 : index
    %10 = vector.load %arg2[%c0_4, %c0_5] : memref<64x32xbf16, #tpu.memory_space<vmem>>, vector<64x32xbf16>
    %11 = arith.truncf %9 : vector<32x512xf32> to vector<32x512xbf16>
    %cst_6 = arith.constant dense<0.000000e+00> : vector<64x512xf32>
    %12 = tpu.matmul %10, %11, %cst_6 {dimension_numbers = #tpu.dot_dimension_numbers<[1], [0], [0], [1], [0, 0, 1, 1], [], []>} : vector<64x32xbf16>, vector<32x512xbf16>, vector<64x512xf32> -> vector<64x512xf32>
    %13 = arith.truncf %12 : vector<64x512xf32> to vector<64x512xbf16>
    %c0_7 = arith.constant 0 : index
    %c0_8 = arith.constant 0 : index
    %14 = vector.load %arg3[%c0_7, %c0_8] : memref<512x1024xbf16, #tpu.memory_space<vmem>>, vector<512x1024xbf16>
    %cst_9 = arith.constant dense<0.000000e+00> : vector<64x1024xf32>
    %15 = tpu.matmul %13, %14, %cst_9 {dimension_numbers = #tpu.dot_dimension_numbers<[1], [0], [0], [1], [0, 0, 1, 1], [], []>} : vector<64x512xbf16>, vector<512x1024xbf16>, vector<64x1024xf32> -> vector<64x1024xf32>
    %16 = vector.extract_strided_slice %15 {offsets = [0, 0], sizes = [64, 512], strides = [1, 1]} : vector<64x1024xf32> to vector<64x512xf32>
    %17 = vector.extract_strided_slice %15 {offsets = [0, 512], sizes = [64, 512], strides = [1, 1]} : vector<64x1024xf32> to vector<64x512xf32>
    %18 = vector.extract_strided_slice %16 {offsets = [0, 0], sizes = [32, 512], strides = [1, 1]} : vector<64x512xf32> to vector<32x512xf32>
    %19 = vector.extract_strided_slice %17 {offsets = [32, 0], sizes = [32, 512], strides = [1, 1]} : vector<64x512xf32> to vector<32x512xf32>
    %20 = arith.subf %18, %19 : vector<32x512xf32>
    %21 = vector.extract_strided_slice %17 {offsets = [0, 0], sizes = [32, 512], strides = [1, 1]} : vector<64x512xf32> to vector<32x512xf32>
    %22 = vector.extract_strided_slice %16 {offsets = [32, 0], sizes = [32, 512], strides = [1, 1]} : vector<64x512xf32> to vector<32x512xf32>
    %23 = arith.addf %21, %22 : vector<32x512xf32>
    %24 = arith.mulf %20, %20 : vector<32x512xf32>
    %25 = arith.mulf %23, %23 : vector<32x512xf32>
    %26 = arith.addf %24, %25 : vector<32x512xf32>
    %27 = math.sqrt %26 : vector<32x512xf32>
    %28 = arith.truncf %27 : vector<32x512xf32> to vector<32x512xbf16>
    %c0_10 = arith.constant 0 : index
    %c0_11 = arith.constant 0 : index
    %29 = vector.load %arg4[%c0_10, %c0_11] : memref<512x128xbf16, #tpu.memory_space<vmem>>, vector<512x128xbf16>
    %cst_12 = arith.constant dense<0.000000e+00> : vector<32x128xf32>
    %30 = tpu.matmul %28, %29, %cst_12 {dimension_numbers = #tpu.dot_dimension_numbers<[1], [0], [0], [1], [0, 0, 1, 1], [], []>} : vector<32x512xbf16>, vector<512x128xbf16>, vector<32x128xf32> -> vector<32x128xf32>
    %31 = math.absf %30 : vector<32x128xf32>
    %c0_13 = arith.constant 0 : index
    %c0_14 = arith.constant 0 : index
    %32 = vector.load %arg6[%c0_13, %c0_14] : memref<32x128xf32, #tpu.memory_space<vmem>>, vector<32x128xf32>
    tpu.vector_store %arg6[%c0_13, %c0_14], %31 {strides = array<i32>} : memref<32x128xf32, #tpu.memory_space<vmem>>, vector<32x128xf32>,
    %c0_15 = arith.constant 0 : index
    %c0_16 = arith.constant 0 : index
    %33 = vector.load %arg5[%c0_15, %c0_16] : memref<32x128xf32, #tpu.memory_space<vmem>>, vector<32x128xf32>
    %34 = arith.mulf %31, %33 : vector<32x128xf32>
    %35 = vector.shape_cast %34 : vector<32x128xf32> to vector<1x32x128xf32>
    %cst_17 = arith.constant dense<0.000000e+00> : vector<1xf32>
    %36 = vector.multi_reduction <add>, %35, %cst_17 [1, 2] : vector<1x32x128xf32> to vector<1xf32>
    %37 = vector.shape_cast %36 : vector<1xf32> to vector<1x1x1xf32>
    %38 = vector.extract %37[0, 0, 0] : f32 from vector<1x1x1xf32>
    %39 = vector.broadcast %38 : f32 to vector<1x1xf32>
    %40 = vector.shape_cast %39 : vector<1x1xf32> to vector<1x1xf32>
    %41 = vector.broadcast %40 : vector<1x1xf32> to vector<8x128xf32>
    %c0_18 = arith.constant 0 : index
    %c0_19 = arith.constant 0 : index
    %42 = vector.load %arg7[%c0_18, %c0_19] : memref<8x128xf32, #tpu.memory_space<vmem>>, vector<8x128xf32>
    tpu.vector_store %arg7[%c0_18, %c0_19], %41 {strides = array<i32>} : memref<8x128xf32, #tpu.memory_space<vmem>>, vector<8x128xf32>,
    return
  }
  func.func @transform_0(%arg0: i32) -> (i32, i32) {
    %c0_i32 = arith.constant 0 : i32
    %c0_i32_0 = arith.constant 0 : i32
    return %c0_i32, %arg0 : i32, i32
  }
  func.func @transform_1(%arg0: i32) -> (i32, i32) {
    %c0_i32 = arith.constant 0 : i32
    %c0_i32_0 = arith.constant 0 : i32
    %c0_i32_1 = arith.constant 0 : i32
    return %c0_i32, %c0_i32_0 : i32, i32
  }
  func.func @transform_2(%arg0: i32) -> (i32, i32) {
    %c0_i32 = arith.constant 0 : i32
    %c0_i32_0 = arith.constant 0 : i32
    %c0_i32_1 = arith.constant 0 : i32
    return %c0_i32, %c0_i32_0 : i32, i32
  }
  func.func @transform_3(%arg0: i32) -> (i32, i32) {
    %c0_i32 = arith.constant 0 : i32
    %c0_i32_0 = arith.constant 0 : i32
    %c0_i32_1 = arith.constant 0 : i32
    return %c0_i32, %c0_i32_0 : i32, i32
  }
  func.func @transform_4(%arg0: i32) -> (i32, i32) {
    %c0_i32 = arith.constant 0 : i32
    %c0_i32_0 = arith.constant 0 : i32
    return %c0_i32, %arg0 : i32, i32
  }
  func.func @transform_5(%arg0: i32) -> (i32, i32) {
    %c0_i32 = arith.constant 0 : i32
    %c0_i32_0 = arith.constant 0 : i32
    return %c0_i32, %arg0 : i32, i32
  }
  func.func @transform_6(%arg0: i32) -> (i32, i32) {
    %c0_i32 = arith.constant 0 : i32
    %c0_i32_0 = arith.constant 0 : i32
    return %arg0, %c0_i32 : i32, i32
  }
}

</mosaic_0001>

<llo_original>
// kernel: cnn_forward.1
$region0: #{cnn_forward.1}
  #allocation0 [shape = 'u32[]', space=smem, size = 0x4, offset = 0x4, fixed_abs, tag = 'smem constant byte address 0x4 - core index']
  #allocation1 [shape = 'u32[144,128]{1,0:T(1,128)}', space=vmem, size = 0x12000, scoped, tag = 'internal scratch']
  %s0 = inlined_call_operand.vmem [shape: f32[32,512], index: 0, kind: input, shape index: {}]
  %s1 = inlined_call_operand.vmem [shape: bf16[64,32], index: 1, kind: input, shape index: {}]
  %s2 = inlined_call_operand.vmem [shape: bf16[512,1024], index: 2, kind: input, shape index: {}]
  %s3 = inlined_call_operand.vmem [shape: bf16[512,128], index: 3, kind: input, shape index: {}]
  %s4 = inlined_call_operand.vmem [shape: f32[32,128], index: 4, kind: input, shape index: {}]
  %s5 = inlined_call_operand.vmem [shape: f32[32,128], index: 5, kind: output, shape index: {0}]
  %s6 = inlined_call_operand.vmem [shape: f32[8,128], index: 6, kind: output, shape index: {1}]
  %7 = xla_tuple %s5, %s6
  %s8 = sld [smem:[#allocation0]]
  $region38: #{cnn_forward.1} parent=0
    _
  %s10 = ssub.s32 1, %s8
  %s11 = scalar_select 0, %s10, %s8
  // Predicated region
  $region2: #{cnn_forward.1} parent=0 // pred_check
    _
  $region3: #{cnn_forward.1} parent=0 // pred_check_branch
    %13 = sbr.rel (0) target = $region5
  $region4: #{cnn_forward.1} parent=0 // pred_region
    _
  $region5: #{cnn_forward.1} parent=0 // pred_fallthru
    _
  // Predicated region
  $region6: #{cnn_forward.1} parent=0 // pred_check
    _
  $region7: #{cnn_forward.1} parent=0 // pred_check_branch
    %15 = sbr.rel (0) target = $region9
  $region8: #{cnn_forward.1} parent=0 // pred_region
    _
  $region9: #{cnn_forward.1} parent=0 // pred_fallthru
    _
  // Predicated region
  $region10: #{cnn_forward.1} parent=0 // pred_check
    _
  $region11: #{cnn_forward.1} parent=0 // pred_check_branch
    %17 = sbr.rel (0) target = $region13
  $region12: #{cnn_forward.1} parent=0 // pred_region
    _
  $region13: #{cnn_forward.1} parent=0 // pred_fallthru
    _
  // Predicated region
  $region14: #{cnn_forward.1} parent=0 // pred_check
    _
  $region15: #{cnn_forward.1} parent=0 // pred_check_branch
    %19 = sbr.rel (0) target = $region17
  $region16: #{cnn_forward.1} parent=0 // pred_region
    _
  $region17: #{cnn_forward.1} parent=0 // pred_fallthru
    _
  // Predicated region
  $region18: #{cnn_forward.1} parent=0 // pred_check
    _
  $region19: #{cnn_forward.1} parent=0 // pred_check_branch
    %21 = sbr.rel (0) target = $region21
  $region20: #{cnn_forward.1} parent=0 // pred_region
    _
  $region21: #{cnn_forward.1} parent=0 // pred_fallthru
    _
  %v23 = vld [vmem:[%s0] sm:$0xff]
  %v24 = vld [vmem:[%s0 + $0x8] sm:$0xff]
  %v25 = vld [vmem:[%s0 + $0x10] sm:$0xff]
  %v26 = vld [vmem:[%s0 + $0x18] sm:$0xff]
  %v27 = vld [vmem:[%s0 + $0x20] sm:$0xff]
  %v28 = vld [vmem:[%s0 + $0x28] sm:$0xff]
  %v29 = vld [vmem:[%s0 + $0x30] sm:$0xff]
  %v30 = vld [vmem:[%s0 + $0x38] sm:$0xff]
  %v31 = vld [vmem:[%s0 + $0x40] sm:$0xff]
  %v32 = vld [vmem:[%s0 + $0x48] sm:$0xff]
  %v33 = vld [vmem:[%s0 + $0x50] sm:$0xff]
  %v34 = vld [vmem:[%s0 + $0x58] sm:$0xff]
  %v35 = vld [vmem:[%s0 + $0x60] sm:$0xff]
  %v36 = vld [vmem:[%s0 + $0x68] sm:$0xff]
  %v37 = vld [vmem:[%s0 + $0x70] sm:$0xff]
  %v38 = vld [vmem:[%s0 + $0x78] sm:$0xff]
  %v39 = vmul.f32 %v23, 256.0
  %v40 = vmul.f32 %v24, 256.0
  %v41 = vmul.f32 %v25, 256.0
  %v42 = vmul.f32 %v26, 256.0
  %v43 = vmul.f32 %v27, 256.0
  %v44 = vmul.f32 %v28, 256.0
  %v45 = vmul.f32 %v29, 256.0
  %v46 = vmul.f32 %v30, 256.0
  %v47 = vmul.f32 %v31, 256.0
  %v48 = vmul.f32 %v32, 256.0
  %v49 = vmul.f32 %v33, 256.0
  %v50 = vmul.f32 %v34, 256.0
  %v51 = vmul.f32 %v35, 256.0
  %v52 = vmul.f32 %v36, 256.0
  %v53 = vmul.f32 %v37, 256.0
  %v54 = vmul.f32 %v38, 256.0
  %v55 = vround.ne.pseudo %v39
  %v56 = vround.ne.pseudo %v40
  %v57 = vround.ne.pseudo %v41
  %v58 = vround.ne.pseudo %v42
  %v59 = vround.ne.pseudo %v43
  %v60 = vround.ne.pseudo %v44
  %v61 = vround.ne.pseudo %v45
  %v62 = vround.ne.pseudo %v46
  %v63 = vround.ne.pseudo %v47
  %v64 = vround.ne.pseudo %v48
  %v65 = vround.ne.pseudo %v49
  %v66 = vround.ne.pseudo %v50
  %v67 = vround.ne.pseudo %v51
  %v68 = vround.ne.pseudo %v52
  %v69 = vround.ne.pseudo %v53
  %v70 = vround.ne.pseudo %v54
  %v71 = vmul.f32 %v55, 0.00390625
  %v72 = vmul.f32 %v56, 0.00390625
  %v73 = vmul.f32 %v57, 0.00390625
  %v74 = vmul.f32 %v58, 0.00390625
  %v75 = vmul.f32 %v59, 0.00390625
  %v76 = vmul.f32 %v60, 0.00390625
  %v77 = vmul.f32 %v61, 0.00390625
  %v78 = vmul.f32 %v62, 0.00390625
  %v79 = vmul.f32 %v63, 0.00390625
  %v80 = vmul.f32 %v64, 0.00390625
  %v81 = vmul.f32 %v65, 0.00390625
  %v82 = vmul.f32 %v66, 0.00390625
  %v83 = vmul.f32 %v67, 0.00390625
  %v84 = vmul.f32 %v68, 0.00390625
  %v85 = vmul.f32 %v69, 0.00390625
  %v86 = vmul.f32 %v70, 0.00390625
  %v87 = vmax.f32 %v71, -256.0
  %v88 = vmax.f32 %v72, -256.0
  %v89 = vmax.f32 %v73, -256.0
  %v90 = vmax.f32 %v74, -256.0
  %v91 = vmax.f32 %v75, -256.0
  %v92 = vmax.f32 %v76, -256.0
  %v93 = vmax.f32 %v77, -256.0
  %v94 = vmax.f32 %v78, -256.0
  %v95 = vmax.f32 %v79, -256.0
  %v96 = vmax.f32 %v80, -256.0
  %v97 = vmax.f32 %v81, -256.0
  %v98 = vmax.f32 %v82, -256.0
  %v99 = vmax.f32 %v83, -256.0
  %v100 = vmax.f32 %v84, -256.0
  %v101 = vmax.f32 %v85, -256.0
  %v102 = vmax.f32 %v86, -256.0
  %v103 = vmin.f32 %v87, 255.0
  %v104 = vmin.f32 %v88, 255.0
  %v105 = vmin.f32 %v89, 255.0
  %v106 = vmin.f32 %v90, 255.0
  %v107 = vmin.f32 %v91, 255.0
  %v108 = vmin.f32 %v92, 255.0
  %v109 = vmin.f32 %v93, 255.0
  %v110 = vmin.f32 %v94, 255.0
  %v111 = vmin.f32 %v95, 255.0
  %v112 = vmin.f32 %v96, 255.0
  %v113 = vmin.f32 %v97, 255.0
  %v114 = vmin.f32 %v98, 255.0
  %v115 = vmin.f32 %v99, 255.0
  %v116 = vmin.f32 %v100, 255.0
  %v117 = vmin.f32 %v101, 255.0
  %v118 = vmin.f32 %v102, 255.0
  %v119 = vld [vmem:[%s1] sm:$0xf]
  %v120 = vld [vmem:[%s1 + $0x4] sm:$0xf]
  %v121 = vld [vmem:[%s1 + $0x8] sm:$0xf]
  %v122 = vld [vmem:[%s1 + $0xc] sm:$0xf]
  %v123 = vld [vmem:[%s1 + $0x10] sm:$0xf]
  %v124 = vld [vmem:[%s1 + $0x14] sm:$0xf]
  %v125 = vld [vmem:[%s1 + $0x18] sm:$0xf]
  %v126 = vld [vmem:[%s1 + $0x1c] sm:$0xf]
  %v127 = vpack.c.bf16 %v107, %v103
  %v128 = vpack.c.bf16 %v108, %v104
  %v129 = vpack.c.bf16 %v109, %v105
  %v130 = vpack.c.bf16 %v110, %v106
  %v131 = vpack.c.bf16 %v115, %v111
  %v132 = vpack.c.bf16 %v116, %v112
  %v133 = vpack.c.bf16 %v117, %v113
  %v134 = vpack.c.bf16 %v118, %v114
  %v143 = vunpack.c.l.b16 %v119
  %v144 = vunpack.c.l.b16 %v120
  %v145 = vunpack.c.l.b16 %v121
  %v146 = vunpack.c.l.b16 %v122
  %v147 = vunpack.c.l.b16 %v123
  %v148 = vunpack.c.l.b16 %v124
  %v149 = vunpack.c.l.b16 %v125
  %v150 = vunpack.c.l.b16 %v126
  %v151 = vpack.c.b16 %v144, %v143
  %v152 = vpack.c.b16 %v146, %v145
  %v153 = vpack.c.b16 %v148, %v147
  %v154 = vpack.c.b16 %v150, %v149
  %vm155 = vcmask 261120
  %v157 = vsel %vm155, %v151, 0
  %v160 = vsel %vm155, %v152, 0
  %v163 = vsel %vm155, %v153, 0
  %v166 = vsel %vm155, %v154, 0
  %168 = vmatprep.subr.bf16.mxu0 %v128
  %169 = vmatpush1.bf16.msra.mxu0 %v127
  %170 = vmatprep.subr.bf16.mxu0 %v132
  %171 = vmatpush1.bf16.msra.mxu0 %v131
  %172 = vmatprep.subr.bf16.mxu0 0
  %173 = vmatpush1.bf16.msra.mxu0 0
  %174 = vmatprep.subr.bf16.mxu0 0
  %175 = vmatpush1.bf16.msra.mxu0 0
  %176 = vmatprep.subr.bf16.mxu0 0
  %177 = vmatpush1.bf16.msra.mxu0 0
  %178 = vmatprep.subr.bf16.mxu0 0
  %179 = vmatpush1.bf16.msra.mxu0 0
  %180 = vmatprep.subr.bf16.mxu0 0
  %181 = vmatpush1.bf16.msra.mxu0 0
  %182 = vmatprep.subr.bf16.mxu0 0
  %183 = vmatpush1.bf16.msra.mxu0 0
  %184 = vmatprep.subr.bf16.mxu0 0
  %185 = vmatpush1.bf16.msra.mxu0 0
  %186 = vmatprep.subr.bf16.mxu0 0
  %187 = vmatpush1.bf16.msra.mxu0 0
  %188 = vmatprep.subr.bf16.mxu0 0
  %189 = vmatpush1.bf16.msra.mxu0 0
  %190 = vmatprep.subr.bf16.mxu0 0
  %191 = vmatpush1.bf16.msra.mxu0 0
  %192 = vmatprep.subr.bf16.mxu0 0
  %193 = vmatpush1.bf16.msra.mxu0 0
  %194 = vmatprep.subr.bf16.mxu0 0
  %195 = vmatpush1.bf16.msra.mxu0 0
  %196 = vmatprep.subr.bf16.mxu0 0
  %197 = vmatpush1.bf16.msra.mxu0 0
  %198 = vmatprep.subr.bf16.mxu0 0
  %199 = vmatpush1.bf16.msra.mxu0 0
  %200 = vmatprep.mubr.bf16.mxu0 0
  %201 = vmatmul.mubr.bf16.gmra.mrb[0].mxu0 %v157
  %v202 = vpop.f32.mrb[0].mxu0
  %v203 = vadd.f32 0.0, %v202
  %v204 = vpop.f32.mrb[0].mxu0
  %v205 = vadd.f32 0.0, %v204
  %v206 = vpop.f32.mrb[0].mxu0
  %v207 = vadd.f32 0.0, %v206
  %v208 = vpop.f32.mrb[0].mxu0
  %v209 = vadd.f32 0.0, %v208
  %210 = vmatprep.mubr.bf16.mxu0 0
  %211 = vmatmul.mubr.bf16.gmra.mrb[0].mxu0 %v160
  %v212 = vpop.f32.mrb[0].mxu0
  %v213 = vadd.f32 0.0, %v212
  %v214 = vpop.f32.mrb[0].mxu0
  %v215 = vadd.f32 0.0, %v214
  %v216 = vpop.f32.mrb[0].mxu0
  %v217 = vadd.f32 0.0, %v216
  %v218 = vpop.f32.mrb[0].mxu0
  %v219 = vadd.f32 0.0, %v218
  %220 = vmatprep.mubr.bf16.mxu0 0
  %221 = vmatmul.mubr.bf16.gmra.mrb[0].mxu0 %v163
  %v222 = vpop.f32.mrb[0].mxu0
  %v223 = vadd.f32 0.0, %v222
  %v224 = vpop.f32.mrb[0].mxu0
  %v225 = vadd.f32 0.0, %v224
  %v226 = vpop.f32.mrb[0].mxu0
  %v227 = vadd.f32 0.0, %v226
  %v228 = vpop.f32.mrb[0].mxu0
  %v229 = vadd.f32 0.0, %v228
  %230 = vmatprep.mubr.bf16.mxu0 0
  %231 = vmatmul.mubr.bf16.gmra.mrb[0].mxu0 %v166
  %v232 = vpop.f32.mrb[0].mxu0
  %v233 = vadd.f32 0.0, %v232
  %v234 = vpop.f32.mrb[0].mxu0
  %v235 = vadd.f32 0.0, %v234
  %v236 = vpop.f32.mrb[0].mxu0
  %v237 = vadd.f32 0.0, %v236
  %v238 = vpop.f32.mrb[0].mxu0
  %v239 = vadd.f32 0.0, %v238
  %240 = vdwg.mxu0
  %241 = vmatprep.subr.bf16.mxu0 %v130
  %242 = vmatpush1.bf16.msra.mxu0 %v129
  %243 = vmatprep.subr.bf16.mxu0 %v134
  %244 = vmatpush1.bf16.msra.mxu0 %v133
  %245 = vmatprep.subr.bf16.mxu0 0
  %246 = vmatpush1.bf16.msra.mxu0 0
  %247 = vmatprep.subr.bf16.mxu0 0
  %248 = vmatpush1.bf16.msra.mxu0 0
  %249 = vmatprep.subr.bf16.mxu0 0
  %250 = vmatpush1.bf16.msra.mxu0 0
  %251 = vmatprep.subr.bf16.mxu0 0
  %252 = vmatpush1.bf16.msra.mxu0 0
  %253 = vmatprep.subr.bf16.mxu0 0
  %254 = vmatpush1.bf16.msra.mxu0 0
  %255 = vmatprep.subr.bf16.mxu0 0
  %256 = vmatpush1.bf16.msra.mxu0 0
  %257 = vmatprep.subr.bf16.mxu0 0
  %258 = vmatpush1.bf16.msra.mxu0 0
  %259 = vmatprep.subr.bf16.mxu0 0
  %260 = vmatpush1.bf16.msra.mxu0 0
  %261 = vmatprep.subr.bf16.mxu0 0
  %262 = vmatpush1.bf16.msra.mxu0 0
  %263 = vmatprep.subr.bf16.mxu0 0
  %264 = vmatpush1.bf16.msra.mxu0 0
  %265 = vmatprep.subr.bf16.mxu0 0
  %266 = vmatpush1.bf16.msra.mxu0 0
  %267 = vmatprep.subr.bf16.mxu0 0
  %268 = vmatpush1.bf16.msra.mxu0 0
  %269 = vmatprep.subr.bf16.mxu0 0
  %270 = vmatpush1.bf16.msra.mxu0 0
  %271 = vmatprep.subr.bf16.mxu0 0
  %272 = vmatpush1.bf16.msra.mxu0 0
  %273 = vmatprep.mubr.bf16.mxu0 0
  %274 = vmatmul.mubr.bf16.gmra.mrb[0].mxu0 %v157
  %v275 = vpop.f32.mrb[0].mxu0
  %v276 = vadd.f32 0.0, %v275
  %v277 = vpop.f32.mrb[0].mxu0
  %v278 = vadd.f32 0.0, %v277
  %v279 = vpop.f32.mrb[0].mxu0
  %v280 = vadd.f32 0.0, %v279
  %v281 = vpop.f32.mrb[0].mxu0
  %v282 = vadd.f32 0.0, %v281
  %283 = vmatprep.mubr.bf16.mxu0 0
  %284 = vmatmul.mubr.bf16.gmra.mrb[0].mxu0 %v160
  %v285 = vpop.f32.mrb[0].mxu0
  %v286 = vadd.f32 0.0, %v285
  %v287 = vpop.f32.mrb[0].mxu0
  %v288 = vadd.f32 0.0, %v287
  %v289 = vpop.f32.mrb[0].mxu0
  %v290 = vadd.f32 0.0, %v289
  %v291 = vpop.f32.mrb[0].mxu0
  %v292 = vadd.f32 0.0, %v291
  %293 = vmatprep.mubr.bf16.mxu0 0
  %294 = vmatmul.mubr.bf16.gmra.mrb[0].mxu0 %v163
  %v295 = vpop.f32.mrb[0].mxu0
  %v296 = vadd.f32 0.0, %v295
  %v297 = vpop.f32.mrb[0].mxu0
  %v298 = vadd.f32 0.0, %v297
  %v299 = vpop.f32.mrb[0].mxu0
  %v300 = vadd.f32 0.0, %v299
  %v301 = vpop.f32.mrb[0].mxu0
  %v302 = vadd.f32 0.0, %v301
  %303 = vmatprep.mubr.bf16.mxu0 0
  %304 = vmatmul.mubr.bf16.gmra.mrb[0].mxu0 %v166
  %v305 = vpop.f32.mrb[0].mxu0
  %v306 = vadd.f32 0.0, %v305
  %v307 = vpop.f32.mrb[0].mxu0
  %v308 = vadd.f32 0.0, %v307
  %v309 = vpop.f32.mrb[0].mxu0
  %v310 = vadd.f32 0.0, %v309
  %v311 = vpop.f32.mrb[0].mxu0
  %v312 = vadd.f32 0.0, %v311
  %313 = vdwg.mxu0
  %v314 = vpack.c.bf16 %v207, %v203
  %v315 = vpack.c.bf16 %v209, %v205
  %v316 = vpack.c.bf16 %v280, %v276
  %v317 = vpack.c.bf16 %v282, %v278
  %v318 = vpack.c.bf16 %v217, %v213
  %v319 = vpack.c.bf16 %v219, %v215
  %v320 = vpack.c.bf16 %v290, %v286
  %v321 = vpack.c.bf16 %v292, %v288
  %v322 = vpack.c.bf16 %v227, %v223
  %v323 = vpack.c.bf16 %v229, %v225
  %v324 = vpack.c.bf16 %v300, %v296
  %v325 = vpack.c.bf16 %v302, %v298
  %v326 = vpack.c.bf16 %v237, %v233
  %v327 = vpack.c.bf16 %v239, %v235
  %v328 = vpack.c.bf16 %v310, %v306
  %v329 = vpack.c.bf16 %v312, %v308
  %v330 = vld [vmem:[%s2] sm:$0xff]
  %v331 = vld [vmem:[%s2 + $0x8] sm:$0xff]
  %v332 = vld [vmem:[%s2 + $0x10] sm:$0xff]
  %v333 = vld [vmem:[%s2 + $0x18] sm:$0xff]
  %v334 = vld [vmem:[%s2 + $0x20] sm:$0xff]
  %v335 = vld [vmem:[%s2 + $0x28] sm:$0xff]
  %v336 = vld [vmem:[%s2 + $0x30] sm:$0xff]
  %v337 = vld [vmem:[%s2 + $0x38] sm:$0xff]
  %v338 = vld [vmem:[%s2 + $0x40] sm:$0xff]
  %v339 = vld [vmem:[%s2 + $0x48] sm:$0xff]
  %v340 = vld [vmem:[%s2 + $0x50] sm:$0xff]
  %v341 = vld [vmem:[%s2 + $0x58] sm:$0xff]
  %v342 = vld [vmem:[%s2 + $0x60] sm:$0xff]
  %v343 = vld [vmem:[%s2 + $0x68] sm:$0xff]
  %v344 = vld [vmem:[%s2 + $0x70] sm:$0xff]
  %v345 = vld [vmem:[%s2 + $0x78] sm:$0xff]
  %v346 = vld [vmem:[%s2 + $0x80] sm:$0xff]
  %v347 = vld [vmem:[%s2 + $0x88] sm:$0xff]
  %v348 = vld [vmem:[%s2 + $0x90] sm:$0xff]
  %v349 = vld [vmem:[%s2 + $0x98] sm:$0xff]
  %v350 = vld [vmem:[%s2 + $0xa0] sm:$0xff]
  %v351 = vld [vmem:[%s2 + $0xa8] sm:$0xff]
  %v352 = vld [vmem:[%s2 + $0xb0] sm:$0xff]
  %v353 = vld [vmem:[%s2 + $0xb8] sm:$0xff]
  %v354 = vld [vmem:[%s2 + $0xc0] sm:$0xff]
  %v355 = vld [vmem:[%s2 + $0xc8] sm:$0xff]
  %v356 = vld [vmem:[%s2 + $0xd0] sm:$0xff]
  %v357 = vld [vmem:[%s2 + $0xd8] sm:$0xff]
  %v358 = vld [vmem:[%s2 + $0xe0] sm:$0xff]
  %v359 = vld [vmem:[%s2 + $0xe8] sm:$0xff]
  %v360 = vld [vmem:[%s2 + $0xf0] sm:$0xff]
  %v361 = vld [vmem:[%s2 + $0xf8] sm:$0xff]
  %v362 = vld [vmem:[%s2 + $0x100] sm:$0xff]
  %v363 = vld [vmem:[%s2 + $0x108] sm:$0xff]
  %v364 = vld [vmem:[%s2 + $0x110] sm:$0xff]
  %v365 = vld [vmem:[%s2 + $0x118] sm:$0xff]
  %v366 = vld [vmem:[%s2 + $0x120] sm:$0xff]
  %v367 = vld [vmem:[%s2 + $0x128] sm:$0xff]
  %v368 = vld [vmem:[%s2 + $0x130] sm:$0xff]
  %v369 = vld [vmem:[%s2 + $0x138] sm:$0xff]
  %v370 = vld [vmem:[%s2 + $0x140] sm:$0xff]
  %v371 = vld [vmem:[%s2 + $0x148] sm:$0xff]
  %v372 = vld [vmem:[%s2 + $0x150] sm:$0xff]
  %v373 = vld [vmem:[%s2 + $0x158] sm:$0xff]
  %v374 = vld [vmem:[%s2 + $0x160] sm:$0xff]
  %v375 = vld [vmem:[%s2 + $0x168] sm:$0xff]
  %v376 = vld [vmem:[%s2 + $0x170] sm:$0xff]
  %v377 = vld [vmem:[%s2 + $0x178] sm:$0xff]
  %v378 = vld [vmem:[%s2 + $0x180] sm:$0xff]
  %v379 = vld [vmem:[%s2 + $0x188] sm:$0xff]
  %v380 = vld [vmem:[%s2 + $0x190] sm:$0xff]
  %v381 = vld [vmem:[%s2 + $0x198] sm:$0xff]
  %v382 = vld [vmem:[%s2 + $0x1a0] sm:$0xff]
  %v383 = vld [vmem:[%s2 + $0x1a8] sm:$0xff]
  %v384 = vld [vmem:[%s2 + $0x1b0] sm:$0xff]
  %v385 = vld [vmem:[%s2 + $0x1b8] sm:$0xff]
  %v386 = vld [vmem:[%s2 + $0x1c0] sm:$0xff]
  %v387 = vld [vmem:[%s2 + $0x1c8] sm:$0xff]
  %v388 = vld [vmem:[%s2 + $0x1d0] sm:$0xff]
  %v389 = vld [vmem:[%s2 + $0x1d8] sm:$0xff]
  %v390 = vld [vmem:[%s2 + $0x1e0] sm:$0xff]
  %v391 = vld [vmem:[%s2 + $0x1e8] sm:$0xff]
  %v392 = vld [vmem:[%s2 + $0x1f0] sm:$0xff]
  %v393 = vld [vmem:[%s2 + $0x1f8] sm:$0xff]
  %v394 = vld [vmem:[%s2 + $0x200] sm:$0xff]
  %v395 = vld [vmem:[%s2 + $0x208] sm:$0xff]
  %v396 = vld [vmem:[%s2 + $0x210] sm:$0xff]
  %v397 = vld [vmem:[%s2 + $0x218] sm:$0xff]
  %v398 = vld [vmem:[%s2 + $0x220] sm:$0xff]
  %v399 = vld [vmem:[%s2 + $0x228] sm:$0xff]
  %v400 = vld [vmem:[%s2 + $0x230] sm:$0xff]
  %v401 = vld [vmem:[%s2 + $0x238] sm:$0xff]
  %v402 = vld [vmem:[%s2 + $0x240] sm:$0xff]
  %v403 = vld [vmem:[%s2 + $0x248] sm:$0xff]
  %v404 = vld [vmem:[%s2 + $0x250] sm:$0xff]
  %v405 = vld [vmem:[%s2 + $0x258] sm:$0xff]
  %v406 = vld [vmem:[%s2 + $0x260] sm:$0xff]
  %v407 = vld [vmem:[%s2 + $0x268] sm:$0xff]
  %v408 = vld [vmem:[%s2 + $0x270] sm:$0xff]
  %v409 = vld [vmem:[%s2 + $0x278] sm:$0xff]
  %v410 = vld [vmem:[%s2 + $0x280] sm:$0xff]
  %v411 = vld [vmem:[%s2 + $0x288] sm:$0xff]
  %v412 = vld [vmem:[%s2 + $0x290] sm:$0xff]
  %v413 = vld [vmem:[%s2 + $0x298] sm:$0xff]
  %v414 = vld [vmem:[%s2 + $0x2a0] sm:$0xff]
  %v415 = vld [vmem:[%s2 + $0x2a8] sm:$0xff]
  %v416 = vld [vmem:[%s2 + $0x2b0] sm:$0xff]
  %v417 = vld [vmem:[%s2 + $0x2b8] sm:$0xff]
  %v418 = vld [vmem:[%s2 + $0x2c0] sm:$0xff]
  %v419 = vld [vmem:[%s2 + $0x2c8] sm:$0xff]
  %v420 = vld [vmem:[%s2 + $0x2d0] sm:$0xff]
  %v421 = vld [vmem:[%s2 + $0x2d8] sm:$0xff]
  %v422 = vld [vmem:[%s2 + $0x2e0] sm:$0xff]
  %v423 = vld [vmem:[%s2 + $0x2e8] sm:$0xff]
  %v424 = vld [vmem:[%s2 + $0x2f0] sm:$0xff]
  %v425 = vld [vmem:[%s2 + $0x2f8] sm:$0xff]
  %v426 = vld [vmem:[%s2 + $0x300] sm:$0xff]
  %v427 = vld [vmem:[%s2 + $0x308] sm:$0xff]
  %v428 = vld [vmem:[%s2 + $0x310] sm:$0xff]
  %v429 = vld [vmem:[%s2 + $0x318] sm:$0xff]
  %v430 = vld [vmem:[%s2 + $0x320] sm:$0xff]
  %v431 = vld [vmem:[%s2 + $0x328] sm:$0xff]
  %v432 = vld [vmem:[%s2 + $0x330] sm:$0xff]
  %v433 = vld [vmem:[%s2 + $0x338] sm:$0xff]
  %v434 = vld [vmem:[%s2 + $0x340] sm:$0xff]
  %v435 = vld [vmem:[%s2 + $0x348] sm:$0xff]
  %v436 = vld [vmem:[%s2 + $0x350] sm:$0xff]
  %v437 = vld [vmem:[%s2 + $0x358] sm:$0xff]
  %v438 = vld [vmem:[%s2 + $0x360] sm:$0xff]
  %v439 = vld [vmem:[%s2 + $0x368] sm:$0xff]
  %v440 = vld [vmem:[%s2 + $0x370] sm:$0xff]
  %v441 = vld [vmem:[%s2 + $0x378] sm:$0xff]
  %v442 = vld [vmem:[%s2 + $0x380] sm:$0xff]
  %v443 = vld [vmem:[%s2 + $0x388] sm:$0xff]
  %v444 = vld [vmem:[%s2 + $0x390] sm:$0xff]
  %v445 = vld [vmem:[%s2 + $0x398] sm:$0xff]
  %v446 = vld [vmem:[%s2 + $0x3a0] sm:$0xff]
  %v447 = vld [vmem:[%s2 + $0x3a8] sm:$0xff]
  %v448 = vld [vmem:[%s2 + $0x3b0] sm:$0xff]
  %v449 = vld [vmem:[%s2 + $0x3b8] sm:$0xff]
  %v450 = vld [vmem:[%s2 + $0x3c0] sm:$0xff]
  %v451 = vld [vmem:[%s2 + $0x3c8] sm:$0xff]
  %v452 = vld [vmem:[%s2 + $0x3d0] sm:$0xff]
  %v453 = vld [vmem:[%s2 + $0x3d8] sm:$0xff]
  %v454 = vld [vmem:[%s2 + $0x3e0] sm:$0xff]
  %v455 = vld [vmem:[%s2 + $0x3e8] sm:$0xff]
  %v456 = vld [vmem:[%s2 + $0x3f0] sm:$0xff]
  %v457 = vld [vmem:[%s2 + $0x3f8] sm:$0xff]
  %v458 = vld [vmem:[%s2 + $0x400] sm:$0xff]
  %v459 = vld [vmem:[%s2 + $0x408] sm:$0xff]
  %v460 = vld [vmem:[%s2 + $0x410] sm:$0xff]
  %v461 = vld [vmem:[%s2 + $0x418] sm:$0xff]
  %v462 = vld [vmem:[%s2 + $0x420] sm:$0xff]
  %v463 = vld [vmem:[%s2 + $0x428] sm:$0xff]
  %v464 = vld [vmem:[%s2 + $0x430] sm:$0xff]
  %v465 = vld [vmem:[%s2 + $0x438] sm:$0xff]
  %v466 = vld [vmem:[%s2 + $0x440] sm:$0xff]
  %v467 = vld [vmem:[%s2 + $0x448] sm:$0xff]
  %v468 = vld [vmem:[%s2 + $0x450] sm:$0xff]
  %v469 = vld [vmem:[%s2 + $0x458] sm:$0xff]
  %v470 = vld [vmem:[%s2 + $0x460] sm:$0xff]
  %v471 = vld [vmem:[%s2 + $0x468] sm:$0xff]
  %v472 = vld [vmem:[%s2 + $0x470] sm:$0xff]
  %v473 = vld [vmem:[%s2 + $0x478] sm:$0xff]
  %v474 = vld [vmem:[%s2 + $0x480] sm:$0xff]
  %v475 = vld [vmem:[%s2 + $0x488] sm:$0xff]
  %v476 = vld [vmem:[%s2 + $0x490] sm:$0xff]
  %v477 = vld [vmem:[%s2 + $0x498] sm:$0xff]
  %v478 = vld [vmem:[%s2 + $0x4a0] sm:$0xff]
  %v479 = vld [vmem:[%s2 + $0x4a8] sm:$0xff]
  %v480 = vld [vmem:[%s2 + $0x4b0] sm:$0xff]
  %v481 = vld [vmem:[%s2 + $0x4b8] sm:$0xff]
  %v482 = vld [vmem:[%s2 + $0x4c0] sm:$0xff]
  %v483 = vld [vmem:[%s2 + $0x4c8] sm:$0xff]
  %v484 = vld [vmem:[%s2 + $0x4d0] sm:$0xff]
  %v485 = vld [vmem:[%s2 + $0x4d8] sm:$0xff]
  %v486 = vld [vmem:[%s2 + $0x4e0] sm:$0xff]
  %v487 = vld [vmem:[%s2 + $0x4e8] sm:$0xff]
  %v488 = vld [vmem:[%s2 + $0x4f0] sm:$0xff]
  %v489 = vld [vmem:[%s2 + $0x4f8] sm:$0xff]
  %v490 = vld [vmem:[%s2 + $0x500] sm:$0xff]
  %v491 = vld [vmem:[%s2 + $0x508] sm:$0xff]
  %v492 = vld [vmem:[%s2 + $0x510] sm:$0xff]
  %v493 = vld [vmem:[%s2 + $0x518] sm:$0xff]
  %v494 = vld [vmem:[%s2 + $0x520] sm:$0xff]
  %v495 = vld [vmem:[%s2 + $0x528] sm:$0xff]
  %v496 = vld [vmem:[%s2 + $0x530] sm:$0xff]
  %v497 = vld [vmem:[%s2 + $0x538] sm:$0xff]
  %v498 = vld [vmem:[%s2 + $0x540] sm:$0xff]
  %v499 = vld [vmem:[%s2 + $0x548] sm:$0xff]
  %v500 = vld [vmem:[%s2 + $0x550] sm:$0xff]
  %v501 = vld [vmem:[%s2 + $0x558] sm:$0xff]
  %v502 = vld [vmem:[%s2 + $0x560] sm:$0xff]
  %v503 = vld [vmem:[%s2 + $0x568] sm:$0xff]
  %v504 = vld [vmem:[%s2 + $0x570] sm:$0xff]
  %v505 = vld [vmem:[%s2 + $0x578] sm:$0xff]
  %v506 = vld [vmem:[%s2 + $0x580] sm:$0xff]
  %v507 = vld [vmem:[%s2 + $0x588] sm:$0xff]
  %v508 = vld [vmem:[%s2 + $0x590] sm:$0xff]
  %v509 = vld [vmem:[%s2 + $0x598] sm:$0xff]
  %v510 = vld [vmem:[%s2 + $0x5a0] sm:$0xff]
  %v511 = vld [vmem:[%s2 + $0x5a8] sm:$0xff]
  %v512 = vld [vmem:[%s2 + $0x5b0] sm:$0xff]
  %v513 = vld [vmem:[%s2 + $0x5b8] sm:$0xff]
  %v514 = vld [vmem:[%s2 + $0x5c0] sm:$0xff]
  %v515 = vld [vmem:[%s2 + $0x5c8] sm:$0xff]
  %v516 = vld [vmem:[%s2 + $0x5d0] sm:$0xff]
  %v517 = vld [vmem:[%s2 + $0x5d8] sm:$0xff]
  %v518 = vld [vmem:[%s2 + $0x5e0] sm:$0xff]
  %v519 = vld [vmem:[%s2 + $0x5e8] sm:$0xff]
  %v520 = vld [vmem:[%s2 + $0x5f0] sm:$0xff]
  %v521 = vld [vmem:[%s2 + $0x5f8] sm:$0xff]
  %v522 = vld [vmem:[%s2 + $0x600] sm:$0xff]
  %v523 = vld [vmem:[%s2 + $0x608] sm:$0xff]
  %v524 = vld [vmem:[%s2 + $0x610] sm:$0xff]
  %v525 = vld [vmem:[%s2 + $0x618] sm:$0xff]
  %v526 = vld [vmem:[%s2 + $0x620] sm:$0xff]
  %v527 = vld [vmem:[%s2 + $0x628] sm:$0xff]
  %v528 = vld [vmem:[%s2 + $0x630] sm:$0xff]
  %v529 = vld [vmem:[%s2 + $0x638] sm:$0xff]
  %v530 = vld [vmem:[%s2 + $0x640] sm:$0xff]
  %v531 = vld [vmem:[%s2 + $0x648] sm:$0xff]
  %v532 = vld [vmem:[%s2 + $0x650] sm:$0xff]
  %v533 = vld [vmem:[%s2 + $0x658] sm:$0xff]
  %v534 = vld [vmem:[%s2 + $0x660] sm:$0xff]
  %v535 = vld [vmem:[%s2 + $0x668] sm:$0xff]
  %v536 = vld [vmem:[%s2 + $0x670] sm:$0xff]
  %v537 = vld [vmem:[%s2 + $0x678] sm:$0xff]
  %v538 = vld [vmem:[%s2 + $0x680] sm:$0xff]
  %v539 = vld [vmem:[%s2 + $0x688] sm:$0xff]
  %v540 = vld [vmem:[%s2 + $0x690] sm:$0xff]
  %v541 = vld [vmem:[%s2 + $0x698] sm:$0xff]
  %v542 = vld [vmem:[%s2 + $0x6a0] sm:$0xff]
  %v543 = vld [vmem:[%s2 + $0x6a8] sm:$0xff]
  %v544 = vld [vmem:[%s2 + $0x6b0] sm:$0xff]
  %v545 = vld [vmem:[%s2 + $0x6b8] sm:$0xff]
  %v546 = vld [vmem:[%s2 + $0x6c0] sm:$0xff]
  %v547 = vld [vmem:[%s2 + $0x6c8] sm:$0xff]
  %v548 = vld [vmem:[%s2 + $0x6d0] sm:$0xff]
  %v549 = vld [vmem:[%s2 + $0x6d8] sm:$0xff]
  %v550 = vld [vmem:[%s2 + $0x6e0] sm:$0xff]
  %v551 = vld [vmem:[%s2 + $0x6e8] sm:$0xff]
  %v552 = vld [vmem:[%s2 + $0x6f0] sm:$0xff]
  %v553 = vld [vmem:[%s2 + $0x6f8] sm:$0xff]
  %v554 = vld [vmem:[%s2 + $0x700] sm:$0xff]
  %v555 = vld [vmem:[%s2 + $0x708] sm:$0xff]
  %v556 = vld [vmem:[%s2 + $0x710] sm:$0xff]
  %v557 = vld [vmem:[%s2 + $0x718] sm:$0xff]
  %v558 = vld [vmem:[%s2 + $0x720] sm:$0xff]
  %v559 = vld [vmem:[%s2 + $0x728] sm:$0xff]
  %v560 = vld [vmem:[%s2 + $0x730] sm:$0xff]
  %v561 = vld [vmem:[%s2 + $0x738] sm:$0xff]
  %v562 = vld [vmem:[%s2 + $0x740] sm:$0xff]
  %v563 = vld [vmem:[%s2 + $0x748] sm:$0xff]
  %v564 = vld [vmem:[%s2 + $0x750] sm:$0xff]
  %v565 = vld [vmem:[%s2 + $0x758] sm:$0xff]
  %v566 = vld [vmem:[%s2 + $0x760] sm:$0xff]
  %v567 = vld [vmem:[%s2 + $0x768] sm:$0xff]
  %v568 = vld [vmem:[%s2 + $0x770] sm:$0xff]
  %v569 = vld [vmem:[%s2 + $0x778] sm:$0xff]
  %v570 = vld [vmem:[%s2 + $0x780] sm:$0xff]
  %v571 = vld [vmem:[%s2 + $0x788] sm:$0xff]
  %v572 = vld [vmem:[%s2 + $0x790] sm:$0xff]
  %v573 = vld [vmem:[%s2 + $0x798] sm:$0xff]
  %v574 = vld [vmem:[%s2 + $0x7a0] sm:$0xff]
  %v575 = vld [vmem:[%s2 + $0x7a8] sm:$0xff]
  %v576 = vld [vmem:[%s2 + $0x7b0] sm:$0xff]
  %v577 = vld [vmem:[%s2 + $0x7b8] sm:$0xff]
  %v578 = vld [vmem:[%s2 + $0x7c0] sm:$0xff]
  %v579 = vld [vmem:[%s2 + $0x7c8] sm:$0xff]
  %v580 = vld [vmem:[%s2 + $0x7d0] sm:$0xff]
  %v581 = vld [vmem:[%s2 + $0x7d8] sm:$0xff]
  %v582 = vld [vmem:[%s2 + $0x7e0] sm:$0xff]
  %v583 = vld [vmem:[%s2 + $0x7e8] sm:$0xff]
  %v584 = vld [vmem:[%s2 + $0x7f0] sm:$0xff]
  %v585 = vld [vmem:[%s2 + $0x7f8] sm:$0xff]
  %v842 = vunpack.c.l.b16 %v330
  %v843 = vunpack.c.h.b16 %v330
  %v844 = vunpack.c.l.b16 %v331
  %v845 = vunpack.c.h.b16 %v331
  %v846 = vunpack.c.l.b16 %v332
  %v847 = vunpack.c.h.b16 %v332
  %v848 = vunpack.c.l.b16 %v333
  %v849 = vunpack.c.h.b16 %v333
  %v850 = vunpack.c.l.b16 %v334
  %v851 = vunpack.c.h.b16 %v334
  %v852 = vunpack.c.l.b16 %v335
  %v853 = vunpack.c.h.b16 %v335
  %v854 = vunpack.c.l.b16 %v336
  %v855 = vunpack.c.h.b16 %v336
  %v856 = vunpack.c.l.b16 %v337
  %v857 = vunpack.c.h.b16 %v337
  %v858 = vunpack.c.l.b16 %v338
  %v859 = vunpack.c.h.b16 %v338
  %v860 = vunpack.c.l.b16 %v339
  %v861 = vunpack.c.h.b16 %v339
  %v862 = vunpack.c.l.b16 %v340
  %v863 = vunpack.c.h.b16 %v340
  %v864 = vunpack.c.l.b16 %v341
  %v865 = vunpack.c.h.b16 %v341
  %v866 = vunpack.c.l.b16 %v342
  %v867 = vunpack.c.h.b16 %v342
  %v868 = vunpack.c.l.b16 %v343
  %v869 = vunpack.c.h.b16 %v343
  %v870 = vunpack.c.l.b16 %v344
  %v871 = vunpack.c.h.b16 %v344
  %v872 = vunpack.c.l.b16 %v345
  %v873 = vunpack.c.h.b16 %v345
  %v874 = vunpack.c.l.b16 %v346
  %v875 = vunpack.c.h.b16 %v346
  %v876 = vunpack.c.l.b16 %v347
  %v877 = vunpack.c.h.b16 %v347
  %v878 = vunpack.c.l.b16 %v348
  %v879 = vunpack.c.h.b16 %v348
  %v880 = vunpack.c.l.b16 %v349
  %v881 = vunpack.c.h.b16 %v349
  %v882 = vunpack.c.l.b16 %v350
  %v883 = vunpack.c.h.b16 %v350
  %v884 = vunpack.c.l.b16 %v351
  %v885 = vunpack.c.h.b16 %v351
  %v886 = vunpack.c.l.b16 %v352
  %v887 = vunpack.c.h.b16 %v352
  %v888 = vunpack.c.l.b16 %v353
  %v889 = vunpack.c.h.b16 %v353
  %v890 = vunpack.c.l.b16 %v354
  %v891 = vunpack.c.h.b16 %v354
  %v892 = vunpack.c.l.b16 %v355
  %v893 = vunpack.c.h.b16 %v355
  %v894 = vunpack.c.l.b16 %v356
  %v895 = vunpack.c.h.b16 %v356
  %v896 = vunpack.c.l.b16 %v357
  %v897 = vunpack.c.h.b16 %v357
  %v898 = vunpack.c.l.b16 %v358
  %v899 = vunpack.c.h.b16 %v358
  %v900 = vunpack.c.l.b16 %v359
  %v901 = vunpack.c.h.b16 %v359
  %v902 = vunpack.c.l.b16 %v360
  %v903 = vunpack.c.h.b16 %v360
  %v904 = vunpack.c.l.b16 %v361
  %v905 = vunpack.c.h.b16 %v361
  %v906 = vunpack.c.l.b16 %v362
  %v907 = vunpack.c.h.b16 %v362
  %v908 = vunpack.c.l.b16 %v363
  %v909 = vunpack.c.h.b16 %v363
  %v910 = vunpack.c.l.b16 %v364
  %v911 = vunpack.c.h.b16 %v364
  %v912 = vunpack.c.l.b16 %v365
  %v913 = vunpack.c.h.b16 %v365
  %v914 = vunpack.c.l.b16 %v366
  %v915 = vunpack.c.h.b16 %v366
  %v916 = vunpack.c.l.b16 %v367
  %v917 = vunpack.c.h.b16 %v367
  %v918 = vunpack.c.l.b16 %v368
  %v919 = vunpack.c.h.b16 %v368
  %v920 = vunpack.c.l.b16 %v369
  %v921 = vunpack.c.h.b16 %v369
  %v922 = vunpack.c.l.b16 %v370
  %v923 = vunpack.c.h.b16 %v370
  %v924 = vunpack.c.l.b16 %v371
  %v925 = vunpack.c.h.b16 %v371
  %v926 = vunpack.c.l.b16 %v372
  %v927 = vunpack.c.h.b16 %v372
  %v928 = vunpack.c.l.b16 %v373
  %v929 = vunpack.c.h.b16 %v373
  %v930 = vunpack.c.l.b16 %v374
  %v931 = vunpack.c.h.b16 %v374
  %v932 = vunpack.c.l.b16 %v375
  %v933 = vunpack.c.h.b16 %v375
  %v934 = vunpack.c.l.b16 %v376
  %v935 = vunpack.c.h.b16 %v376
  %v936 = vunpack.c.l.b16 %v377
  %v937 = vunpack.c.h.b16 %v377
  %v938 = vunpack.c.l.b16 %v378
  %v939 = vunpack.c.h.b16 %v378
  %v940 = vunpack.c.l.b16 %v379
  %v941 = vunpack.c.h.b16 %v379
  %v942 = vunpack.c.l.b16 %v380
  %v943 = vunpack.c.h.b16 %v380
  %v944 = vunpack.c.l.b16 %v381
  %v945 = vunpack.c.h.b16 %v381
  %v946 = vunpack.c.l.b16 %v382
  %v947 = vunpack.c.h.b16 %v382
  %v948 = vunpack.c.l.b16 %v383
  %v949 = vunpack.c.h.b16 %v383
  %v950 = vunpack.c.l.b16 %v384
  %v951 = vunpack.c.h.b16 %v384
  %v952 = vunpack.c.l.b16 %v385
  %v953 = vunpack.c.h.b16 %v385
  %v954 = vunpack.c.l.b16 %v386
  %v955 = vunpack.c.h.b16 %v386
  %v956 = vunpack.c.l.b16 %v387
  %v957 = vunpack.c.h.b16 %v387
  %v958 = vunpack.c.l.b16 %v388
  %v959 = vunpack.c.h.b16 %v388
  %v960 = vunpack.c.l.b16 %v389
  %v961 = vunpack.c.h.b16 %v389
  %v962 = vunpack.c.l.b16 %v390
  %v963 = vunpack.c.h.b16 %v390
  %v964 = vunpack.c.l.b16 %v391
  %v965 = vunpack.c.h.b16 %v391
  %v966 = vunpack.c.l.b16 %v392
  %v967 = vunpack.c.h.b16 %v392
  %v968 = vunpack.c.l.b16 %v393
  %v969 = vunpack.c.h.b16 %v393
  %v970 = vunpack.c.l.b16 %v394
  %v971 = vunpack.c.h.b16 %v394
  %v972 = vunpack.c.l.b16 %v395
  %v973 = vunpack.c.h.b16 %v395
  %v974 = vunpack.c.l.b16 %v396
  %v975 = vunpack.c.h.b16 %v396
  %v976 = vunpack.c.l.b16 %v397
  %v977 = vunpack.c.h.b16 %v397
  %v978 = vunpack.c.l.b16 %v398
  %v979 = vunpack.c.h.b16 %v398
  %v980 = vunpack.c.l.b16 %v399
  %v981 = vunpack.c.h.b16 %v399
  %v982 = vunpack.c.l.b16 %v400
  %v983 = vunpack.c.h.b16 %v400
  %v984 = vunpack.c.l.b16 %v401
  %v985 = vunpack.c.h.b16 %v401
  %v986 = vunpack.c.l.b16 %v402
  %v987 = vunpack.c.h.b16 %v402
  %v988 = vunpack.c.l.b16 %v403
  %v989 = vunpack.c.h.b16 %v403
  %v990 = vunpack.c.l.b16 %v404
  %v991 = vunpack.c.h.b16 %v404
  %v992 = vunpack.c.l.b16 %v405
  %v993 = vunpack.c.h.b16 %v405
  %v994 = vunpack.c.l.b16 %v406
  %v995 = vunpack.c.h.b16 %v406
  %v996 = vunpack.c.l.b16 %v407
  %v997 = vunpack.c.h.b16 %v407
  %v998 = vunpack.c.l.b16 %v408
  %v999 = vunpack.c.h.b16 %v408
  %v1000 = vunpack.c.l.b16 %v409
  %v1001 = vunpack.c.h.b16 %v409
  %v1002 = vunpack.c.l.b16 %v410
  %v1003 = vunpack.c.h.b16 %v410
  %v1004 = vunpack.c.l.b16 %v411
  %v1005 = vunpack.c.h.b16 %v411
  %v1006 = vunpack.c.l.b16 %v412
  %v1007 = vunpack.c.h.b16 %v412
  %v1008 = vunpack.c.l.b16 %v413
  %v1009 = vunpack.c.h.b16 %v413
  %v1010 = vunpack.c.l.b16 %v414
  %v1011 = vunpack.c.h.b16 %v414
  %v1012 = vunpack.c.l.b16 %v415
  %v1013 = vunpack.c.h.b16 %v415
  %v1014 = vunpack.c.l.b16 %v416
  %v1015 = vunpack.c.h.b16 %v416
  %v1016 = vunpack.c.l.b16 %v417
  %v1017 = vunpack.c.h.b16 %v417
  %v1018 = vunpack.c.l.b16 %v418
  %v1019 = vunpack.c.h.b16 %v418
  %v1020 = vunpack.c.l.b16 %v419
  %v1021 = vunpack.c.h.b16 %v419
  %v1022 = vunpack.c.l.b16 %v420
  %v1023 = vunpack.c.h.b16 %v420
  %v1024 = vunpack.c.l.b16 %v421
  %v1025 = vunpack.c.h.b16 %v421
  %v1026 = vunpack.c.l.b16 %v422
  %v1027 = vunpack.c.h.b16 %v422
  %v1028 = vunpack.c.l.b16 %v423
  %v1029 = vunpack.c.h.b16 %v423
  %v1030 = vunpack.c.l.b16 %v424
  %v1031 = vunpack.c.h.b16 %v424
  %v1032 = vunpack.c.l.b16 %v425
  %v1033 = vunpack.c.h.b16 %v425
  %v1034 = vunpack.c.l.b16 %v426
  %v1035 = vunpack.c.h.b16 %v426
  %v1036 = vunpack.c.l.b16 %v427
  %v1037 = vunpack.c.h.b16 %v427
  %v1038 = vunpack.c.l.b16 %v428
  %v1039 = vunpack.c.h.b16 %v428
  %v1040 = vunpack.c.l.b16 %v429
  %v1041 = vunpack.c.h.b16 %v429
  %v1042 = vunpack.c.l.b16 %v430
  %v1043 = vunpack.c.h.b16 %v430
  %v1044 = vunpack.c.l.b16 %v431
  %v1045 = vunpack.c.h.b16 %v431
  %v1046 = vunpack.c.l.b16 %v432
  %v1047 = vunpack.c.h.b16 %v432
  %v1048 = vunpack.c.l.b16 %v433
  %v1049 = vunpack.c.h.b16 %v433
  %v1050 = vunpack.c.l.b16 %v434
  %v1051 = vunpack.c.h.b16 %v434
  %v1052 = vunpack.c.l.b16 %v435
  %v1053 = vunpack.c.h.b16 %v435
  %v1054 = vunpack.c.l.b16 %v436
  %v1055 = vunpack.c.h.b16 %v436
  %v1056 = vunpack.c.l.b16 %v437
  %v1057 = vunpack.c.h.b16 %v437
  %v1058 = vunpack.c.l.b16 %v438
  %v1059 = vunpack.c.h.b16 %v438
  %v1060 = vunpack.c.l.b16 %v439
  %v1061 = vunpack.c.h.b16 %v439
  %v1062 = vunpack.c.l.b16 %v440
  %v1063 = vunpack.c.h.b16 %v440
  %v1064 = vunpack.c.l.b16 %v441
  %v1065 = vunpack.c.h.b16 %v441
  %v1066 = vunpack.c.l.b16 %v442
  %v1067 = vunpack.c.h.b16 %v442
  %v1068 = vunpack.c.l.b16 %v443
  %v1069 = vunpack.c.h.b16 %v443
  %v1070 = vunpack.c.l.b16 %v444
  %v1071 = vunpack.c.h.b16 %v444
  %v1072 = vunpack.c.l.b16 %v445
  %v1073 = vunpack.c.h.b16 %v445
  %v1074 = vunpack.c.l.b16 %v446
  %v1075 = vunpack.c.h.b16 %v446
  %v1076 = vunpack.c.l.b16 %v447
  %v1077 = vunpack.c.h.b16 %v447
  %v1078 = vunpack.c.l.b16 %v448
  %v1079 = vunpack.c.h.b16 %v448
  %v1080 = vunpack.c.l.b16 %v449
  %v1081 = vunpack.c.h.b16 %v449
  %v1082 = vunpack.c.l.b16 %v450
  %v1083 = vunpack.c.h.b16 %v450
  %v1084 = vunpack.c.l.b16 %v451
  %v1085 = vunpack.c.h.b16 %v451
  %v1086 = vunpack.c.l.b16 %v452
  %v1087 = vunpack.c.h.b16 %v452
  %v1088 = vunpack.c.l.b16 %v453
  %v1089 = vunpack.c.h.b16 %v453
  %v1090 = vunpack.c.l.b16 %v454
  %v1091 = vunpack.c.h.b16 %v454
  %v1092 = vunpack.c.l.b16 %v455
  %v1093 = vunpack.c.h.b16 %v455
  %v1094 = vunpack.c.l.b16 %v456
  %v1095 = vunpack.c.h.b16 %v456
  %v1096 = vunpack.c.l.b16 %v457
  %v1097 = vunpack.c.h.b16 %v457
  %v1098 = vunpack.c.l.b16 %v458
  %v1099 = vunpack.c.h.b16 %v458
  %v1100 = vunpack.c.l.b16 %v459
  %v1101 = vunpack.c.h.b16 %v459
  %v1102 = vunpack.c.l.b16 %v460
  %v1103 = vunpack.c.h.b16 %v460
  %v1104 = vunpack.c.l.b16 %v461
  %v1105 = vunpack.c.h.b16 %v461
  %v1106 = vunpack.c.l.b16 %v462
  %v1107 = vunpack.c.h.b16 %v462
  %v1108 = vunpack.c.l.b16 %v463
  %v1109 = vunpack.c.h.b16 %v463
  %v1110 = vunpack.c.l.b16 %v464
  %v1111 = vunpack.c.h.b16 %v464
  %v1112 = vunpack.c.l.b16 %v465
  %v1113 = vunpack.c.h.b16 %v465
  %v1114 = vunpack.c.l.b16 %v466
  %v1115 = vunpack.c.h.b16 %v466
  %v1116 = vunpack.c.l.b16 %v467
  %v1117 = vunpack.c.h.b16 %v467
  %v1118 = vunpack.c.l.b16 %v468
  %v1119 = vunpack.c.h.b16 %v468
  %v1120 = vunpack.c.l.b16 %v469
  %v1121 = vunpack.c.h.b16 %v469
  %v1122 = vunpack.c.l.b16 %v470
  %v1123 = vunpack.c.h.b16 %v470
  %v1124 = vunpack.c.l.b16 %v471
  %v1125 = vunpack.c.h.b16 %v471
  %v1126 = vunpack.c.l.b16 %v472
  %v1127 = vunpack.c.h.b16 %v472
  %v1128 = vunpack.c.l.b16 %v473
  %v1129 = vunpack.c.h.b16 %v473
  %v1130 = vunpack.c.l.b16 %v474
  %v1131 = vunpack.c.h.b16 %v474
  %v1132 = vunpack.c.l.b16 %v475
  %v1133 = vunpack.c.h.b16 %v475
  %v1134 = vunpack.c.l.b16 %v476
  %v1135 = vunpack.c.h.b16 %v476
  %v1136 = vunpack.c.l.b16 %v477
  %v1137 = vunpack.c.h.b16 %v477
  %v1138 = vunpack.c.l.b16 %v478
  %v1139 = vunpack.c.h.b16 %v478
  %v1140 = vunpack.c.l.b16 %v479
  %v1141 = vunpack.c.h.b16 %v479
  %v1142 = vunpack.c.l.b16 %v480
  %v1143 = vunpack.c.h.b16 %v480
  %v1144 = vunpack.c.l.b16 %v481
  %v1145 = vunpack.c.h.b16 %v481
  %v1146 = vunpack.c.l.b16 %v482
  %v1147 = vunpack.c.h.b16 %v482
  %v1148 = vunpack.c.l.b16 %v483
  %v1149 = vunpack.c.h.b16 %v483
  %v1150 = vunpack.c.l.b16 %v484
  %v1151 = vunpack.c.h.b16 %v484
  %v1152 = vunpack.c.l.b16 %v485
  %v1153 = vunpack.c.h.b16 %v485
  %v1154 = vunpack.c.l.b16 %v486
  %v1155 = vunpack.c.h.b16 %v486
  %v1156 = vunpack.c.l.b16 %v487
  %v1157 = vunpack.c.h.b16 %v487
  %v1158 = vunpack.c.l.b16 %v488
  %v1159 = vunpack.c.h.b16 %v488
  %v1160 = vunpack.c.l.b16 %v489
  %v1161 = vunpack.c.h.b16 %v489
  %v1162 = vunpack.c.l.b16 %v490
  %v1163 = vunpack.c.h.b16 %v490
  %v1164 = vunpack.c.l.b16 %v491
  %v1165 = vunpack.c.h.b16 %v491
  %v1166 = vunpack.c.l.b16 %v492
  %v1167 = vunpack.c.h.b16 %v492
  %v1168 = vunpack.c.l.b16 %v493
  %v1169 = vunpack.c.h.b16 %v493
  %v1170 = vunpack.c.l.b16 %v494
  %v1171 = vunpack.c.h.b16 %v494
  %v1172 = vunpack.c.l.b16 %v495
  %v1173 = vunpack.c.h.b16 %v495
  %v1174 = vunpack.c.l.b16 %v496
  %v1175 = vunpack.c.h.b16 %v496
  %v1176 = vunpack.c.l.b16 %v497
  %v1177 = vunpack.c.h.b16 %v497
  %v1178 = vunpack.c.l.b16 %v498
  %v1179 = vunpack.c.h.b16 %v498
  %v1180 = vunpack.c.l.b16 %v499
  %v1181 = vunpack.c.h.b16 %v499
  %v1182 = vunpack.c.l.b16 %v500
  %v1183 = vunpack.c.h.b16 %v500
  %v1184 = vunpack.c.l.b16 %v501
  %v1185 = vunpack.c.h.b16 %v501
  %v1186 = vunpack.c.l.b16 %v502
  %v1187 = vunpack.c.h.b16 %v502
  %v1188 = vunpack.c.l.b16 %v503
  %v1189 = vunpack.c.h.b16 %v503
  %v1190 = vunpack.c.l.b16 %v504
  %v1191 = vunpack.c.h.b16 %v504
  %v1192 = vunpack.c.l.b16 %v505
  %v1193 = vunpack.c.h.b16 %v505
  %v1194 = vunpack.c.l.b16 %v506
  %v1195 = vunpack.c.h.b16 %v506
  %v1196 = vunpack.c.l.b16 %v507
  %v1197 = vunpack.c.h.b16 %v507
  %v1198 = vunpack.c.l.b16 %v508
  %v1199 = vunpack.c.h.b16 %v508
  %v1200 = vunpack.c.l.b16 %v509
  %v1201 = vunpack.c.h.b16 %v509
  %v1202 = vunpack.c.l.b16 %v510
  %v1203 = vunpack.c.h.b16 %v510
  %v1204 = vunpack.c.l.b16 %v511
  %v1205 = vunpack.c.h.b16 %v511
  %v1206 = vunpack.c.l.b16 %v512
  %v1207 = vunpack.c.h.b16 %v512
  %v1208 = vunpack.c.l.b16 %v513
  %v1209 = vunpack.c.h.b16 %v513
  %v1210 = vunpack.c.l.b16 %v514
  %v1211 = vunpack.c.h.b16 %v514
  %v1212 = vunpack.c.l.b16 %v515
  %v1213 = vunpack.c.h.b16 %v515
  %v1214 = vunpack.c.l.b16 %v516
  %v1215 = vunpack.c.h.b16 %v516
  %v1216 = vunpack.c.l.b16 %v517
  %v1217 = vunpack.c.h.b16 %v517
  %v1218 = vunpack.c.l.b16 %v518
  %v1219 = vunpack.c.h.b16 %v518
  %v1220 = vunpack.c.l.b16 %v519
  %v1221 = vunpack.c.h.b16 %v519
  %v1222 = vunpack.c.l.b16 %v520
  %v1223 = vunpack.c.h.b16 %v520
  %v1224 = vunpack.c.l.b16 %v521
  %v1225 = vunpack.c.h.b16 %v521
  %v1226 = vunpack.c.l.b16 %v522
  %v1227 = vunpack.c.h.b16 %v522
  %v1228 = vunpack.c.l.b16 %v523
  %v1229 = vunpack.c.h.b16 %v523
  %v1230 = vunpack.c.l.b16 %v524
  %v1231 = vunpack.c.h.b16 %v524
  %v1232 = vunpack.c.l.b16 %v525
  %v1233 = vunpack.c.h.b16 %v525
  %v1234 = vunpack.c.l.b16 %v526
  %v1235 = vunpack.c.h.b16 %v526
  %v1236 = vunpack.c.l.b16 %v527
  %v1237 = vunpack.c.h.b16 %v527
  %v1238 = vunpack.c.l.b16 %v528
  %v1239 = vunpack.c.h.b16 %v528
  %v1240 = vunpack.c.l.b16 %v529
  %v1241 = vunpack.c.h.b16 %v529
  %v1242 = vunpack.c.l.b16 %v530
  %v1243 = vunpack.c.h.b16 %v530
  %v1244 = vunpack.c.l.b16 %v531
  %v1245 = vunpack.c.h.b16 %v531
  %v1246 = vunpack.c.l.b16 %v532
  %v1247 = vunpack.c.h.b16 %v532
  %v1248 = vunpack.c.l.b16 %v533
  %v1249 = vunpack.c.h.b16 %v533
  %v1250 = vunpack.c.l.b16 %v534
  %v1251 = vunpack.c.h.b16 %v534
  %v1252 = vunpack.c.l.b16 %v535
  %v1253 = vunpack.c.h.b16 %v535
  %v1254 = vunpack.c.l.b16 %v536
  %v1255 = vunpack.c.h.b16 %v536
  %v1256 = vunpack.c.l.b16 %v537
  %v1257 = vunpack.c.h.b16 %v537
  %v1258 = vunpack.c.l.b16 %v538
  %v1259 = vunpack.c.h.b16 %v538
  %v1260 = vunpack.c.l.b16 %v539
  %v1261 = vunpack.c.h.b16 %v539
  %v1262 = vunpack.c.l.b16 %v540
  %v1263 = vunpack.c.h.b16 %v540
  %v1264 = vunpack.c.l.b16 %v541
  %v1265 = vunpack.c.h.b16 %v541
  %v1266 = vunpack.c.l.b16 %v542
  %v1267 = vunpack.c.h.b16 %v542
  %v1268 = vunpack.c.l.b16 %v543
  %v1269 = vunpack.c.h.b16 %v543
  %v1270 = vunpack.c.l.b16 %v544
  %v1271 = vunpack.c.h.b16 %v544
  %v1272 = vunpack.c.l.b16 %v545
  %v1273 = vunpack.c.h.b16 %v545
  %v1274 = vunpack.c.l.b16 %v546
  %v1275 = vunpack.c.h.b16 %v546
  %v1276 = vunpack.c.l.b16 %v547
  %v1277 = vunpack.c.h.b16 %v547
  %v1278 = vunpack.c.l.b16 %v548
  %v1279 = vunpack.c.h.b16 %v548
  %v1280 = vunpack.c.l.b16 %v549
  %v1281 = vunpack.c.h.b16 %v549
  %v1282 = vunpack.c.l.b16 %v550
  %v1283 = vunpack.c.h.b16 %v550
  %v1284 = vunpack.c.l.b16 %v551
  %v1285 = vunpack.c.h.b16 %v551
  %v1286 = vunpack.c.l.b16 %v552
  %v1287 = vunpack.c.h.b16 %v552
  %v1288 = vunpack.c.l.b16 %v553
  %v1289 = vunpack.c.h.b16 %v553
  %v1290 = vunpack.c.l.b16 %v554
  %v1291 = vunpack.c.h.b16 %v554
  %v1292 = vunpack.c.l.b16 %v555
  %v1293 = vunpack.c.h.b16 %v555
  %v1294 = vunpack.c.l.b16 %v556
  %v1295 = vunpack.c.h.b16 %v556
  %v1296 = vunpack.c.l.b16 %v557
  %v1297 = vunpack.c.h.b16 %v557
  %v1298 = vunpack.c.l.b16 %v558
  %v1299 = vunpack.c.h.b16 %v558
  %v1300 = vunpack.c.l.b16 %v559
  %v1301 = vunpack.c.h.b16 %v559
  %v1302 = vunpack.c.l.b16 %v560
  %v1303 = vunpack.c.h.b16 %v560
  %v1304 = vunpack.c.l.b16 %v561
  %v1305 = vunpack.c.h.b16 %v561
  %v1306 = vunpack.c.l.b16 %v562
  %v1307 = vunpack.c.h.b16 %v562
  %v1308 = vunpack.c.l.b16 %v563
  %v1309 = vunpack.c.h.b16 %v563
  %v1310 = vunpack.c.l.b16 %v564
  %v1311 = vunpack.c.h.b16 %v564
  %v1312 = vunpack.c.l.b16 %v565
  %v1313 = vunpack.c.h.b16 %v565
  %v1314 = vunpack.c.l.b16 %v566
  %v1315 = vunpack.c.h.b16 %v566
  %v1316 = vunpack.c.l.b16 %v567
  %v1317 = vunpack.c.h.b16 %v567
  %v1318 = vunpack.c.l.b16 %v568
  %v1319 = vunpack.c.h.b16 %v568
  %v1320 = vunpack.c.l.b16 %v569
  %v1321 = vunpack.c.h.b16 %v569
  %v1322 = vunpack.c.l.b16 %v570
  %v1323 = vunpack.c.h.b16 %v570
  %v1324 = vunpack.c.l.b16 %v571
  %v1325 = vunpack.c.h.b16 %v571
  %v1326 = vunpack.c.l.b16 %v572
  %v1327 = vunpack.c.h.b16 %v572
  %v1328 = vunpack.c.l.b16 %v573
  %v1329 = vunpack.c.h.b16 %v573
  %v1330 = vunpack.c.l.b16 %v574
  %v1331 = vunpack.c.h.b16 %v574
  %v1332 = vunpack.c.l.b16 %v575
  %v1333 = vunpack.c.h.b16 %v575
  %v1334 = vunpack.c.l.b16 %v576
  %v1335 = vunpack.c.h.b16 %v576
  %v1336 = vunpack.c.l.b16 %v577
  %v1337 = vunpack.c.h.b16 %v577
  %v1338 = vunpack.c.l.b16 %v578
  %v1339 = vunpack.c.h.b16 %v578
  %v1340 = vunpack.c.l.b16 %v579
  %v1341 = vunpack.c.h.b16 %v579
  %v1342 = vunpack.c.l.b16 %v580
  %v1343 = vunpack.c.h.b16 %v580
  %v1344 = vunpack.c.l.b16 %v581
  %v1345 = vunpack.c.h.b16 %v581
  %v1346 = vunpack.c.l.b16 %v582
  %v1347 = vunpack.c.h.b16 %v582
  %v1348 = vunpack.c.l.b16 %v583
  %v1349 = vunpack.c.h.b16 %v583
  %v1350 = vunpack.c.l.b16 %v584
  %v1351 = vunpack.c.h.b16 %v584
  %v1352 = vunpack.c.l.b16 %v585
  %v1353 = vunpack.c.h.b16 %v585
  %v1354 = vpack.c.b16 %v850, %v842
  %v1355 = vpack.c.b16 %v851, %v843
  %v1356 = vpack.c.b16 %v852, %v844
  %v1357 = vpack.c.b16 %v853, %v845
  %v1358 = vpack.c.b16 %v854, %v846
  %v1359 = vpack.c.b16 %v855, %v847
  %v1360 = vpack.c.b16 %v856, %v848
  %v1361 = vpack.c.b16 %v857, %v849
  %v1362 = vpack.c.b16 %v866, %v858
  %v1363 = vpack.c.b16 %v867, %v859
  %v1364 = vpack.c.b16 %v868, %v860
  %v1365 = vpack.c.b16 %v869, %v861
  %v1366 = vpack.c.b16 %v870, %v862
  %v1367 = vpack.c.b16 %v871, %v863
  %v1368 = vpack.c.b16 %v872, %v864
  %v1369 = vpack.c.b16 %v873, %v865
  %v1370 = vpack.c.b16 %v882, %v874
  %v1371 = vpack.c.b16 %v883, %v875
  %v1372 = vpack.c.b16 %v884, %v876
  %v1373 = vpack.c.b16 %v885, %v877
  %v1374 = vpack.c.b16 %v886, %v878
  %v1375 = vpack.c.b16 %v887, %v879
  %v1376 = vpack.c.b16 %v888, %v880
  %v1377 = vpack.c.b16 %v889, %v881
  %v1378 = vpack.c.b16 %v898, %v890
  %v1379 = vpack.c.b16 %v899, %v891
  %v1380 = vpack.c.b16 %v900, %v892
  %v1381 = vpack.c.b16 %v901, %v893
  %v1382 = vpack.c.b16 %v902, %v894
  %v1383 = vpack.c.b16 %v903, %v895
  %v1384 = vpack.c.b16 %v904, %v896
  %v1385 = vpack.c.b16 %v905, %v897
  %v1386 = vpack.c.b16 %v914, %v906
  %v1387 = vpack.c.b16 %v915, %v907
  %v1388 = vpack.c.b16 %v916, %v908
  %v1389 = vpack.c.b16 %v917, %v909
  %v1390 = vpack.c.b16 %v918, %v910
  %v1391 = vpack.c.b16 %v919, %v911
  %v1392 = vpack.c.b16 %v920, %v912
  %v1393 = vpack.c.b16 %v921, %v913
  %v1394 = vpack.c.b16 %v930, %v922
  %v1395 = vpack.c.b16 %v931, %v923
  %v1396 = vpack.c.b16 %v932, %v924
  %v1397 = vpack.c.b16 %v933, %v925
  %v1398 = vpack.c.b16 %v934, %v926
  %v1399 = vpack.c.b16 %v935, %v927
  %v1400 = vpack.c.b16 %v936, %v928
  %v1401 = vpack.c.b16 %v937, %v929
  %v1402 = vpack.c.b16 %v946, %v938
  %v1403 = vpack.c.b16 %v947, %v939
  %v1404 = vpack.c.b16 %v948, %v940
  %v1405 = vpack.c.b16 %v949, %v941
  %v1406 = vpack.c.b16 %v950, %v942
  %v1407 = vpack.c.b16 %v951, %v943
  %v1408 = vpack.c.b16 %v952, %v944
  %v1409 = vpack.c.b16 %v953, %v945
  %v1410 = vpack.c.b16 %v962, %v954
  %v1411 = vpack.c.b16 %v963, %v955
  %v1412 = vpack.c.b16 %v964, %v956
  %v1413 = vpack.c.b16 %v965, %v957
  %v1414 = vpack.c.b16 %v966, %v958
  %v1415 = vpack.c.b16 %v967, %v959
  %v1416 = vpack.c.b16 %v968, %v960
  %v1417 = vpack.c.b16 %v969, %v961
  %v1418 = vpack.c.b16 %v978, %v970
  %v1419 = vpack.c.b16 %v979, %v971
  %v1420 = vpack.c.b16 %v980, %v972
  %v1421 = vpack.c.b16 %v981, %v973
  %v1422 = vpack.c.b16 %v982, %v974
  %v1423 = vpack.c.b16 %v983, %v975
  %v1424 = vpack.c.b16 %v984, %v976
  %v1425 = vpack.c.b16 %v985, %v977
  %v1426 = vpack.c.b16 %v994, %v986
  %v1427 = vpack.c.b16 %v995, %v987
  %v1428 = vpack.c.b16 %v996, %v988
  %v1429 = vpack.c.b16 %v997, %v989
  %v1430 = vpack.c.b16 %v998, %v990
  %v1431 = vpack.c.b16 %v999, %v991
  %v1432 = vpack.c.b16 %v1000, %v992
  %v1433 = vpack.c.b16 %v1001, %v993
  %v1434 = vpack.c.b16 %v1010, %v1002
  %v1435 = vpack.c.b16 %v1011, %v1003
  %v1436 = vpack.c.b16 %v1012, %v1004
  %v1437 = vpack.c.b16 %v1013, %v1005
  %v1438 = vpack.c.b16 %v1014, %v1006
  %v1439 = vpack.c.b16 %v1015, %v1007
  %v1440 = vpack.c.b16 %v1016, %v1008
  %v1441 = vpack.c.b16 %v1017, %v1009
  %v1442 = vpack.c.b16 %v1026, %v1018
  %v1443 = vpack.c.b16 %v1027, %v1019
  %v1444 = vpack.c.b16 %v1028, %v1020
  %v1445 = vpack.c.b16 %v1029, %v1021
  %v1446 = vpack.c.b16 %v1030, %v1022
  %v1447 = vpack.c.b16 %v1031, %v1023
  %v1448 = vpack.c.b16 %v1032, %v1024
  %v1449 = vpack.c.b16 %v1033, %v1025
  %v1450 = vpack.c.b16 %v1042, %v1034
  %v1451 = vpack.c.b16 %v1043, %v1035
  %v1452 = vpack.c.b16 %v1044, %v1036
  %v1453 = vpack.c.b16 %v1045, %v1037
  %v1454 = vpack.c.b16 %v1046, %v1038
  %v1455 = vpack.c.b16 %v1047, %v1039
  %v1456 = vpack.c.b16 %v1048, %v1040
  %v1457 = vpack.c.b16 %v1049, %v1041
  %v1458 = vpack.c.b16 %v1058, %v1050
  %v1459 = vpack.c.b16 %v1059, %v1051
  %v1460 = vpack.c.b16 %v1060, %v1052
  %v1461 = vpack.c.b16 %v1061, %v1053
  %v1462 = vpack.c.b16 %v1062, %v1054
  %v1463 = vpack.c.b16 %v1063, %v1055
  %v1464 = vpack.c.b16 %v1064, %v1056
  %v1465 = vpack.c.b16 %v1065, %v1057
  %v1466 = vpack.c.b16 %v1074, %v1066
  %v1467 = vpack.c.b16 %v1075, %v1067
  %v1468 = vpack.c.b16 %v1076, %v1068
  %v1469 = vpack.c.b16 %v1077, %v1069
  %v1470 = vpack.c.b16 %v1078, %v1070
  %v1471 = vpack.c.b16 %v1079, %v1071
  %v1472 = vpack.c.b16 %v1080, %v1072
  %v1473 = vpack.c.b16 %v1081, %v1073
  %v1474 = vpack.c.b16 %v1090, %v1082
  %v1475 = vpack.c.b16 %v1091, %v1083
  %v1476 = vpack.c.b16 %v1092, %v1084
  %v1477 = vpack.c.b16 %v1093, %v1085
  %v1478 = vpack.c.b16 %v1094, %v1086
  %v1479 = vpack.c.b16 %v1095, %v1087
  %v1480 = vpack.c.b16 %v1096, %v1088
  %v1481 = vpack.c.b16 %v1097, %v1089
  %v1482 = vpack.c.b16 %v1106, %v1098
  %v1483 = vpack.c.b16 %v1107, %v1099
  %v1484 = vpack.c.b16 %v1108, %v1100
  %v1485 = vpack.c.b16 %v1109, %v1101
  %v1486 = vpack.c.b16 %v1110, %v1102
  %v1487 = vpack.c.b16 %v1111, %v1103
  %v1488 = vpack.c.b16 %v1112, %v1104
  %v1489 = vpack.c.b16 %v1113, %v1105
  %v1490 = vpack.c.b16 %v1122, %v1114
  %v1491 = vpack.c.b16 %v1123, %v1115
  %v1492 = vpack.c.b16 %v1124, %v1116
  %v1493 = vpack.c.b16 %v1125, %v1117
  %v1494 = vpack.c.b16 %v1126, %v1118
  %v1495 = vpack.c.b16 %v1127, %v1119
  %v1496 = vpack.c.b16 %v1128, %v1120
  %v1497 = vpack.c.b16 %v1129, %v1121
  %v1498 = vpack.c.b16 %v1138, %v1130
  %v1499 = vpack.c.b16 %v1139, %v1131
  %v1500 = vpack.c.b16 %v1140, %v1132
  %v1501 = vpack.c.b16 %v1141, %v1133
  %v1502 = vpack.c.b16 %v1142, %v1134
  %v1503 = vpack.c.b16 %v1143, %v1135
  %v1504 = vpack.c.b16 %v1144, %v1136
  %v1505 = vpack.c.b16 %v1145, %v1137
  %v1506 = vpack.c.b16 %v1154, %v1146
  %v1507 = vpack.c.b16 %v1155, %v1147
  %v1508 = vpack.c.b16 %v1156, %v1148
  %v1509 = vpack.c.b16 %v1157, %v1149
  %v1510 = vpack.c.b16 %v1158, %v1150
  %v1511 = vpack.c.b16 %v1159, %v1151
  %v1512 = vpack.c.b16 %v1160, %v1152
  %v1513 = vpack.c.b16 %v1161, %v1153
  %v1514 = vpack.c.b16 %v1170, %v1162
  %v1515 = vpack.c.b16 %v1171, %v1163
  %v1516 = vpack.c.b16 %v1172, %v1164
  %v1517 = vpack.c.b16 %v1173, %v1165
  %v1518 = vpack.c.b16 %v1174, %v1166
  %v1519 = vpack.c.b16 %v1175, %v1167
  %v1520 = vpack.c.b16 %v1176, %v1168
  %v1521 = vpack.c.b16 %v1177, %v1169
  %v1522 = vpack.c.b16 %v1186, %v1178
  %v1523 = vpack.c.b16 %v1187, %v1179
  %v1524 = vpack.c.b16 %v1188, %v1180
  %v1525 = vpack.c.b16 %v1189, %v1181
  %v1526 = vpack.c.b16 %v1190, %v1182
  %v1527 = vpack.c.b16 %v1191, %v1183
  %v1528 = vpack.c.b16 %v1192, %v1184
  %v1529 = vpack.c.b16 %v1193, %v1185
  %v1530 = vpack.c.b16 %v1202, %v1194
  %v1531 = vpack.c.b16 %v1203, %v1195
  %v1532 = vpack.c.b16 %v1204, %v1196
  %v1533 = vpack.c.b16 %v1205, %v1197
  %v1534 = vpack.c.b16 %v1206, %v1198
  %v1535 = vpack.c.b16 %v1207, %v1199
  %v1536 = vpack.c.b16 %v1208, %v1200
  %v1537 = vpack.c.b16 %v1209, %v1201
  %v1538 = vpack.c.b16 %v1218, %v1210
  %v1539 = vpack.c.b16 %v1219, %v1211
  %v1540 = vpack.c.b16 %v1220, %v1212
  %v1541 = vpack.c.b16 %v1221, %v1213
  %v1542 = vpack.c.b16 %v1222, %v1214
  %v1543 = vpack.c.b16 %v1223, %v1215
  %v1544 = vpack.c.b16 %v1224, %v1216
  %v1545 = vpack.c.b16 %v1225, %v1217
  %v1546 = vpack.c.b16 %v1234, %v1226
  %v1547 = vpack.c.b16 %v1235, %v1227
  %v1548 = vpack.c.b16 %v1236, %v1228
  %v1549 = vpack.c.b16 %v1237, %v1229
  %v1550 = vpack.c.b16 %v1238, %v1230
  %v1551 = vpack.c.b16 %v1239, %v1231
  %v1552 = vpack.c.b16 %v1240, %v1232
  %v1553 = vpack.c.b16 %v1241, %v1233
  %v1554 = vpack.c.b16 %v1250, %v1242
  %v1555 = vpack.c.b16 %v1251, %v1243
  %v1556 = vpack.c.b16 %v1252, %v1244
  %v1557 = vpack.c.b16 %v1253, %v1245
  %v1558 = vpack.c.b16 %v1254, %v1246
  %v1559 = vpack.c.b16 %v1255, %v1247
  %v1560 = vpack.c.b16 %v1256, %v1248
  %v1561 = vpack.c.b16 %v1257, %v1249
  %v1562 = vpack.c.b16 %v1266, %v1258
  %v1563 = vpack.c.b16 %v1267, %v1259
  %v1564 = vpack.c.b16 %v1268, %v1260
  %v1565 = vpack.c.b16 %v1269, %v1261
  %v1566 = vpack.c.b16 %v1270, %v1262
  %v1567 = vpack.c.b16 %v1271, %v1263
  %v1568 = vpack.c.b16 %v1272, %v1264
  %v1569 = vpack.c.b16 %v1273, %v1265
  %v1570 = vpack.c.b16 %v1282, %v1274
  %v1571 = vpack.c.b16 %v1283, %v1275
  %v1572 = vpack.c.b16 %v1284, %v1276
  %v1573 = vpack.c.b16 %v1285, %v1277
  %v1574 = vpack.c.b16 %v1286, %v1278
  %v1575 = vpack.c.b16 %v1287, %v1279
  %v1576 = vpack.c.b16 %v1288, %v1280
  %v1577 = vpack.c.b16 %v1289, %v1281
  %v1578 = vpack.c.b16 %v1298, %v1290
  %v1579 = vpack.c.b16 %v1299, %v1291
  %v1580 = vpack.c.b16 %v1300, %v1292
  %v1581 = vpack.c.b16 %v1301, %v1293
  %v1582 = vpack.c.b16 %v1302, %v1294
  %v1583 = vpack.c.b16 %v1303, %v1295
  %v1584 = vpack.c.b16 %v1304, %v1296
  %v1585 = vpack.c.b16 %v1305, %v1297
  %v1586 = vpack.c.b16 %v1314, %v1306
  %v1587 = vpack.c.b16 %v1315, %v1307
  %v1588 = vpack.c.b16 %v1316, %v1308
  %v1589 = vpack.c.b16 %v1317, %v1309
  %v1590 = vpack.c.b16 %v1318, %v1310
  %v1591 = vpack.c.b16 %v1319, %v1311
  %v1592 = vpack.c.b16 %v1320, %v1312
  %v1593 = vpack.c.b16 %v1321, %v1313
  %v1594 = vpack.c.b16 %v1330, %v1322
  %v1595 = vpack.c.b16 %v1331, %v1323
  %v1596 = vpack.c.b16 %v1332, %v1324
  %v1597 = vpack.c.b16 %v1333, %v1325
  %v1598 = vpack.c.b16 %v1334, %v1326
  %v1599 = vpack.c.b16 %v1335, %v1327
  %v1600 = vpack.c.b16 %v1336, %v1328
  %v1601 = vpack.c.b16 %v1337, %v1329
  %v1602 = vpack.c.b16 %v1346, %v1338
  %v1603 = vpack.c.b16 %v1347, %v1339
  %v1604 = vpack.c.b16 %v1348, %v1340
  %v1605 = vpack.c.b16 %v1349, %v1341
  %v1606 = vpack.c.b16 %v1350, %v1342
  %v1607 = vpack.c.b16 %v1351, %v1343
  %v1608 = vpack.c.b16 %v1352, %v1344
  %v1609 = vpack.c.b16 %v1353, %v1345
  %1866 = vmatprep.subr.bf16.mxu0 %v1355
  %1867 = vmatpush1.bf16.msra.mxu0 %v1354
  %1868 = vmatprep.subr.bf16.mxu0 %v1363
  %1869 = vmatpush1.bf16.msra.mxu0 %v1362
  %1870 = vmatprep.subr.bf16.mxu0 %v1371
  %1871 = vmatpush1.bf16.msra.mxu0 %v1370
  %1872 = vmatprep.subr.bf16.mxu0 %v1379
  %1873 = vmatpush1.bf16.msra.mxu0 %v1378
  %1874 = vmatprep.subr.bf16.mxu0 %v1387
  %1875 = vmatpush1.bf16.msra.mxu0 %v1386
  %1876 = vmatprep.subr.bf16.mxu0 %v1395
  %1877 = vmatpush1.bf16.msra.mxu0 %v1394
  %1878 = vmatprep.subr.bf16.mxu0 %v1403
  %1879 = vmatpush1.bf16.msra.mxu0 %v1402
  %1880 = vmatprep.subr.bf16.mxu0 %v1411
  %1881 = vmatpush1.bf16.msra.mxu0 %v1410
  %1882 = vmatprep.subr.bf16.mxu0 %v1419
  %1883 = vmatpush1.bf16.msra.mxu0 %v1418
  %1884 = vmatprep.subr.bf16.mxu0 %v1427
  %1885 = vmatpush1.bf16.msra.mxu0 %v1426
  %1886 = vmatprep.subr.bf16.mxu0 %v1435
  %1887 = vmatpush1.bf16.msra.mxu0 %v1434
  %1888 = vmatprep.subr.bf16.mxu0 %v1443
  %1889 = vmatpush1.bf16.msra.mxu0 %v1442
  %1890 = vmatprep.subr.bf16.mxu0 %v1451
  %1891 = vmatpush1.bf16.msra.mxu0 %v1450
  %1892 = vmatprep.subr.bf16.mxu0 %v1459
  %1893 = vmatpush1.bf16.msra.mxu0 %v1458
  %1894 = vmatprep.subr.bf16.mxu0 %v1467
  %1895 = vmatpush1.bf16.msra.mxu0 %v1466
  %1896 = vmatprep.subr.bf16.mxu0 %v1475
  %1897 = vmatpush1.bf16.msra.mxu0 %v1474
  %1898 = vmatprep.mubr.bf16.mxu0 %v315
  %1899 = vmatmul.mubr.bf16.gmra.mrb[0].mxu0 %v314
  %v1900 = vpop.f32.mrb[0].mxu0
  %v1901 = vadd.f32 0.0, %v1900
  %v1902 = vpop.f32.mrb[0].mxu0
  %v1903 = vadd.f32 0.0, %v1902
  %v1904 = vpop.f32.mrb[0].mxu0
  %v1905 = vadd.f32 0.0, %v1904
  %v1906 = vpop.f32.mrb[0].mxu0
  %v1907 = vadd.f32 0.0, %v1906
  %1908 = vmatprep.mubr.bf16.mxu0 %v319
  %1909 = vmatmul.mubr.bf16.gmra.mrb[0].mxu0 %v318
  %v1910 = vpop.f32.mrb[0].mxu0
  %v1911 = vadd.f32 0.0, %v1910
  %v1912 = vpop.f32.mrb[0].mxu0
  %v1913 = vadd.f32 0.0, %v1912
  %v1914 = vpop.f32.mrb[0].mxu0
  %v1915 = vadd.f32 0.0, %v1914
  %v1916 = vpop.f32.mrb[0].mxu0
  %v1917 = vadd.f32 0.0, %v1916
  %1918 = vmatprep.mubr.bf16.mxu0 %v323
  %1919 = vmatmul.mubr.bf16.gmra.mrb[0].mxu0 %v322
  %v1920 = vpop.f32.mrb[0].mxu0
  %v1921 = vadd.f32 0.0, %v1920
  %v1922 = vpop.f32.mrb[0].mxu0
  %v1923 = vadd.f32 0.0, %v1922
  %v1924 = vpop.f32.mrb[0].mxu0
  %v1925 = vadd.f32 0.0, %v1924
  %v1926 = vpop.f32.mrb[0].mxu0
  %v1927 = vadd.f32 0.0, %v1926
  %1928 = vmatprep.mubr.bf16.mxu0 %v327
  %1929 = vmatmul.mubr.bf16.gmra.mrb[0].mxu0 %v326
  %v1930 = vpop.f32.mrb[0].mxu0
  %v1931 = vadd.f32 0.0, %v1930
  %v1932 = vpop.f32.mrb[0].mxu0
  %v1933 = vadd.f32 0.0, %v1932
  %v1934 = vpop.f32.mrb[0].mxu0
  %v1935 = vadd.f32 0.0, %v1934
  %v1936 = vpop.f32.mrb[0].mxu0
  %v1937 = vadd.f32 0.0, %v1936
  %1938 = vdwg.mxu0
  %1939 = vmatprep.subr.bf16.mxu0 %v1483
  %1940 = vmatpush1.bf16.msra.mxu0 %v1482
  %1941 = vmatprep.subr.bf16.mxu0 %v1491
  %1942 = vmatpush1.bf16.msra.mxu0 %v1490
  %1943 = vmatprep.subr.bf16.mxu0 %v1499
  %1944 = vmatpush1.bf16.msra.mxu0 %v1498
  %1945 = vmatprep.subr.bf16.mxu0 %v1507
  %1946 = vmatpush1.bf16.msra.mxu0 %v1506
  %1947 = vmatprep.subr.bf16.mxu0 %v1515
  %1948 = vmatpush1.bf16.msra.mxu0 %v1514
  %1949 = vmatprep.subr.bf16.mxu0 %v1523
  %1950 = vmatpush1.bf16.msra.mxu0 %v1522
  %1951 = vmatprep.subr.bf16.mxu0 %v1531
  %1952 = vmatpush1.bf16.msra.mxu0 %v1530
  %1953 = vmatprep.subr.bf16.mxu0 %v1539
  %1954 = vmatpush1.bf16.msra.mxu0 %v1538
  %1955 = vmatprep.subr.bf16.mxu0 %v1547
  %1956 = vmatpush1.bf16.msra.mxu0 %v1546
  %1957 = vmatprep.subr.bf16.mxu0 %v1555
  %1958 = vmatpush1.bf16.msra.mxu0 %v1554
  %1959 = vmatprep.subr.bf16.mxu0 %v1563
  %1960 = vmatpush1.bf16.msra.mxu0 %v1562
  %1961 = vmatprep.subr.bf16.mxu0 %v1571
  %1962 = vmatpush1.bf16.msra.mxu0 %v1570
  %1963 = vmatprep.subr.bf16.mxu0 %v1579
  %1964 = vmatpush1.bf16.msra.mxu0 %v1578
  %1965 = vmatprep.subr.bf16.mxu0 %v1587
  %1966 = vmatpush1.bf16.msra.mxu0 %v1586
  %1967 = vmatprep.subr.bf16.mxu0 %v1595
  %1968 = vmatpush1.bf16.msra.mxu0 %v1594
  %1969 = vmatprep.subr.bf16.mxu0 %v1603
  %1970 = vmatpush1.bf16.msra.mxu0 %v1602
  %1971 = vmatprep.mubr.bf16.mxu0 %v317
  %1972 = vmatmul.mubr.bf16.gmra.mrb[0].mxu0 %v316
  %v1973 = vpop.f32.mrb[0].mxu0
  %v1974 = vadd.f32 %v1901, %v1973
  %v1975 = vpop.f32.mrb[0].mxu0
  %v1976 = vadd.f32 %v1903, %v1975
  %v1977 = vpop.f32.mrb[0].mxu0
  %v1978 = vadd.f32 %v1905, %v1977
  %v1979 = vpop.f32.mrb[0].mxu0
  %v1980 = vadd.f32 %v1907, %v1979
  %1981 = vmatprep.mubr.bf16.mxu0 %v321
  %1982 = vmatmul.mubr.bf16.gmra.mrb[0].mxu0 %v320
  %v1983 = vpop.f32.mrb[0].mxu0
  %v1984 = vadd.f32 %v1911, %v1983
  %v1985 = vpop.f32.mrb[0].mxu0
  %v1986 = vadd.f32 %v1913, %v1985
  %v1987 = vpop.f32.mrb[0].mxu0
  %v1988 = vadd.f32 %v1915, %v1987
  %v1989 = vpop.f32.mrb[0].mxu0
  %v1990 = vadd.f32 %v1917, %v1989
  %1991 = vmatprep.mubr.bf16.mxu0 %v325
  %1992 = vmatmul.mubr.bf16.gmra.mrb[0].mxu0 %v324
  %v1993 = vpop.f32.mrb[0].mxu0
  %v1994 = vadd.f32 %v1921, %v1993
  %v1995 = vpop.f32.mrb[0].mxu0
  %v1996 = vadd.f32 %v1923, %v1995
  %v1997 = vpop.f32.mrb[0].mxu0
  %v1998 = vadd.f32 %v1925, %v1997
  %v1999 = vpop.f32.mrb[0].mxu0
  %v2000 = vadd.f32 %v1927, %v1999
  %2001 = vmatprep.mubr.bf16.mxu0 %v329
  %2002 = vmatmul.mubr.bf16.gmra.mrb[0].mxu0 %v328
  %v2003 = vpop.f32.mrb[0].mxu0
  %v2004 = vadd.f32 %v1931, %v2003
  %v2005 = vpop.f32.mrb[0].mxu0
  %v2006 = vadd.f32 %v1933, %v2005
  %v2007 = vpop.f32.mrb[0].mxu0
  %v2008 = vadd.f32 %v1935, %v2007
  %v2009 = vpop.f32.mrb[0].mxu0
  %v2010 = vadd.f32 %v1937, %v2009
  %2011 = vdwg.mxu0
  %2012 = vmatprep.subr.bf16.mxu0 %v1357
  %2013 = vmatpush1.bf16.msra.mxu0 %v1356
  %2014 = vmatprep.subr.bf16.mxu0 %v1365
  %2015 = vmatpush1.bf16.msra.mxu0 %v1364
  %2016 = vmatprep.subr.bf16.mxu0 %v1373
  %2017 = vmatpush1.bf16.msra.mxu0 %v1372
  %2018 = vmatprep.subr.bf16.mxu0 %v1381
  %2019 = vmatpush1.bf16.msra.mxu0 %v1380
  %2020 = vmatprep.subr.bf16.mxu0 %v1389
  %2021 = vmatpush1.bf16.msra.mxu0 %v1388
  %2022 = vmatprep.subr.bf16.mxu0 %v1397
  %2023 = vmatpush1.bf16.msra.mxu0 %v1396
  %2024 = vmatprep.subr.bf16.mxu0 %v1405
  %2025 = vmatpush1.bf16.msra.mxu0 %v1404
  %2026 = vmatprep.subr.bf16.mxu0 %v1413
  %2027 = vmatpush1.bf16.msra.mxu0 %v1412
  %2028 = vmatprep.subr.bf16.mxu0 %v1421
  %2029 = vmatpush1.bf16.msra.mxu0 %v1420
  %2030 = vmatprep.subr.bf16.mxu0 %v1429
  %2031 = vmatpush1.bf16.msra.mxu0 %v1428
  %2032 = vmatprep.subr.bf16.mxu0 %v1437
  %2033 = vmatpush1.bf16.msra.mxu0 %v1436
  %2034 = vmatprep.subr.bf16.mxu0 %v1445
  %2035 = vmatpush1.bf16.msra.mxu0 %v1444
  %2036 = vmatprep.subr.bf16.mxu0 %v1453
  %2037 = vmatpush1.bf16.msra.mxu0 %v1452
  %2038 = vmatprep.subr.bf16.mxu0 %v1461
  %2039 = vmatpush1.bf16.msra.mxu0 %v1460
  %2040 = vmatprep.subr.bf16.mxu0 %v1469
  %2041 = vmatpush1.bf16.msra.mxu0 %v1468
  %2042 = vmatprep.subr.bf16.mxu0 %v1477
  %2043 = vmatpush1.bf16.msra.mxu0 %v1476
  %2044 = vmatprep.mubr.bf16.mxu0 %v315
  %2045 = vmatmul.mubr.bf16.gmra.mrb[0].mxu0 %v314
  %v2046 = vpop.f32.mrb[0].mxu0
  %v2047 = vadd.f32 0.0, %v2046
  %v2048 = vpop.f32.mrb[0].mxu0
  %v2049 = vadd.f32 0.0, %v2048
  %v2050 = vpop.f32.mrb[0].mxu0
  %v2051 = vadd.f32 0.0, %v2050
  %v2052 = vpop.f32.mrb[0].mxu0
  %v2053 = vadd.f32 0.0, %v2052
  %2054 = vmatprep.mubr.bf16.mxu0 %v319
  %2055 = vmatmul.mubr.bf16.gmra.mrb[0].mxu0 %v318
  %v2056 = vpop.f32.mrb[0].mxu0
  %v2057 = vadd.f32 0.0, %v2056
  %v2058 = vpop.f32.mrb[0].mxu0
  %v2059 = vadd.f32 0.0, %v2058
  %v2060 = vpop.f32.mrb[0].mxu0
  %v2061 = vadd.f32 0.0, %v2060
  %v2062 = vpop.f32.mrb[0].mxu0
  %v2063 = vadd.f32 0.0, %v2062
  %2064 = vmatprep.mubr.bf16.mxu0 %v323
  %2065 = vmatmul.mubr.bf16.gmra.mrb[0].mxu0 %v322
  %v2066 = vpop.f32.mrb[0].mxu0
  %v2067 = vadd.f32 0.0, %v2066
  %v2068 = vpop.f32.mrb[0].mxu0
  %v2069 = vadd.f32 0.0, %v2068
  %v2070 = vpop.f32.mrb[0].mxu0
  %v2071 = vadd.f32 0.0, %v2070
  %v2072 = vpop.f32.mrb[0].mxu0
  %v2073 = vadd.f32 0.0, %v2072
  %2074 = vmatprep.mubr.bf16.mxu0 %v327
  %2075 = vmatmul.mubr.bf16.gmra.mrb[0].mxu0 %v326
  %v2076 = vpop.f32.mrb[0].mxu0
  %v2077 = vadd.f32 0.0, %v2076
  %v2078 = vpop.f32.mrb[0].mxu0
  %v2079 = vadd.f32 0.0, %v2078
  %v2080 = vpop.f32.mrb[0].mxu0
  %v2081 = vadd.f32 0.0, %v2080
  %v2082 = vpop.f32.mrb[0].mxu0
  %v2083 = vadd.f32 0.0, %v2082
  %2084 = vdwg.mxu0
  %2085 = vmatprep.subr.bf16.mxu0 %v1485
  %2086 = vmatpush1.bf16.msra.mxu0 %v1484
  %2087 = vmatprep.subr.bf16.mxu0 %v1493
  %2088 = vmatpush1.bf16.msra.mxu0 %v1492
  %2089 = vmatprep.subr.bf16.mxu0 %v1501
  %2090 = vmatpush1.bf16.msra.mxu0 %v1500
  %2091 = vmatprep.subr.bf16.mxu0 %v1509
  %2092 = vmatpush1.bf16.msra.mxu0 %v1508
  %2093 = vmatprep.subr.bf16.mxu0 %v1517
  %2094 = vmatpush1.bf16.msra.mxu0 %v1516
  %2095 = vmatprep.subr.bf16.mxu0 %v1525
  %2096 = vmatpush1.bf16.msra.mxu0 %v1524
  %2097 = vmatprep.subr.bf16.mxu0 %v1533
  %2098 = vmatpush1.bf16.msra.mxu0 %v1532
  %2099 = vmatprep.subr.bf16.mxu0 %v1541
  %2100 = vmatpush1.bf16.msra.mxu0 %v1540
  %2101 = vmatprep.subr.bf16.mxu0 %v1549
  %2102 = vmatpush1.bf16.msra.mxu0 %v1548
  %2103 = vmatprep.subr.bf16.mxu0 %v1557
  %2104 = vmatpush1.bf16.msra.mxu0 %v1556
  %2105 = vmatprep.subr.bf16.mxu0 %v1565
  %2106 = vmatpush1.bf16.msra.mxu0 %v1564
  %2107 = vmatprep.subr.bf16.mxu0 %v1573
  %2108 = vmatpush1.bf16.msra.mxu0 %v1572
  %2109 = vmatprep.subr.bf16.mxu0 %v1581
  %2110 = vmatpush1.bf16.msra.mxu0 %v1580
  %2111 = vmatprep.subr.bf16.mxu0 %v1589
  %2112 = vmatpush1.bf16.msra.mxu0 %v1588
  %2113 = vmatprep.subr.bf16.mxu0 %v1597
  %2114 = vmatpush1.bf16.msra.mxu0 %v1596
  %2115 = vmatprep.subr.bf16.mxu0 %v1605
  %2116 = vmatpush1.bf16.msra.mxu0 %v1604
  %2117 = vmatprep.mubr.bf16.mxu0 %v317
  %2118 = vmatmul.mubr.bf16.gmra.mrb[0].mxu0 %v316
  %v2119 = vpop.f32.mrb[0].mxu0
  %v2120 = vadd.f32 %v2047, %v2119
  %v2121 = vpop.f32.mrb[0].mxu0
  %v2122 = vadd.f32 %v2049, %v2121
  %v2123 = vpop.f32.mrb[0].mxu0
  %v2124 = vadd.f32 %v2051, %v2123
  %v2125 = vpop.f32.mrb[0].mxu0
  %v2126 = vadd.f32 %v2053, %v2125
  %2127 = vmatprep.mubr.bf16.mxu0 %v321
  %2128 = vmatmul.mubr.bf16.gmra.mrb[0].mxu0 %v320
  %v2129 = vpop.f32.mrb[0].mxu0
  %v2130 = vadd.f32 %v2057, %v2129
  %v2131 = vpop.f32.mrb[0].mxu0
  %v2132 = vadd.f32 %v2059, %v2131
  %v2133 = vpop.f32.mrb[0].mxu0
  %v2134 = vadd.f32 %v2061, %v2133
  %v2135 = vpop.f32.mrb[0].mxu0
  %v2136 = vadd.f32 %v2063, %v2135
  %2137 = vmatprep.mubr.bf16.mxu0 %v325
  %2138 = vmatmul.mubr.bf16.gmra.mrb[0].mxu0 %v324
  %v2139 = vpop.f32.mrb[0].mxu0
  %v2140 = vadd.f32 %v2067, %v2139
  %v2141 = vpop.f32.mrb[0].mxu0
  %v2142 = vadd.f32 %v2069, %v2141
  %v2143 = vpop.f32.mrb[0].mxu0
  %v2144 = vadd.f32 %v2071, %v2143
  %v2145 = vpop.f32.mrb[0].mxu0
  %v2146 = vadd.f32 %v2073, %v2145
  %2147 = vmatprep.mubr.bf16.mxu0 %v329
  %2148 = vmatmul.mubr.bf16.gmra.mrb[0].mxu0 %v328
  %v2149 = vpop.f32.mrb[0].mxu0
  %v2150 = vadd.f32 %v2077, %v2149
  %v2151 = vpop.f32.mrb[0].mxu0
  %v2152 = vadd.f32 %v2079, %v2151
  %v2153 = vpop.f32.mrb[0].mxu0
  %v2154 = vadd.f32 %v2081, %v2153
  %v2155 = vpop.f32.mrb[0].mxu0
  %v2156 = vadd.f32 %v2083, %v2155
  %2157 = vdwg.mxu0
  %2158 = vmatprep.subr.bf16.mxu0 %v1359
  %2159 = vmatpush1.bf16.msra.mxu0 %v1358
  %2160 = vmatprep.subr.bf16.mxu0 %v1367
  %2161 = vmatpush1.bf16.msra.mxu0 %v1366
  %2162 = vmatprep.subr.bf16.mxu0 %v1375
  %2163 = vmatpush1.bf16.msra.mxu0 %v1374
  %2164 = vmatprep.subr.bf16.mxu0 %v1383
  %2165 = vmatpush1.bf16.msra.mxu0 %v1382
  %2166 = vmatprep.subr.bf16.mxu0 %v1391
  %2167 = vmatpush1.bf16.msra.mxu0 %v1390
  %2168 = vmatprep.subr.bf16.mxu0 %v1399
  %2169 = vmatpush1.bf16.msra.mxu0 %v1398
  %2170 = vmatprep.subr.bf16.mxu0 %v1407
  %2171 = vmatpush1.bf16.msra.mxu0 %v1406
  %2172 = vmatprep.subr.bf16.mxu0 %v1415
  %2173 = vmatpush1.bf16.msra.mxu0 %v1414
  %2174 = vmatprep.subr.bf16.mxu0 %v1423
  %2175 = vmatpush1.bf16.msra.mxu0 %v1422
  %2176 = vmatprep.subr.bf16.mxu0 %v1431
  %2177 = vmatpush1.bf16.msra.mxu0 %v1430
  %2178 = vmatprep.subr.bf16.mxu0 %v1439
  %2179 = vmatpush1.bf16.msra.mxu0 %v1438
  %2180 = vmatprep.subr.bf16.mxu0 %v1447
  %2181 = vmatpush1.bf16.msra.mxu0 %v1446
  %2182 = vmatprep.subr.bf16.mxu0 %v1455
  %2183 = vmatpush1.bf16.msra.mxu0 %v1454
  %2184 = vmatprep.subr.bf16.mxu0 %v1463
  %2185 = vmatpush1.bf16.msra.mxu0 %v1462
  %2186 = vmatprep.subr.bf16.mxu0 %v1471
  %2187 = vmatpush1.bf16.msra.mxu0 %v1470
  %2188 = vmatprep.subr.bf16.mxu0 %v1479
  %2189 = vmatpush1.bf16.msra.mxu0 %v1478
  %2190 = vmatprep.mubr.bf16.mxu0 %v315
  %2191 = vmatmul.mubr.bf16.gmra.mrb[0].mxu0 %v314
  %v2192 = vpop.f32.mrb[0].mxu0
  %v2193 = vadd.f32 0.0, %v2192
  %v2194 = vpop.f32.mrb[0].mxu0
  %v2195 = vadd.f32 0.0, %v2194
  %v2196 = vpop.f32.mrb[0].mxu0
  %v2197 = vadd.f32 0.0, %v2196
  %v2198 = vpop.f32.mrb[0].mxu0
  %v2199 = vadd.f32 0.0, %v2198
  %2200 = vmatprep.mubr.bf16.mxu0 %v319
  %2201 = vmatmul.mubr.bf16.gmra.mrb[0].mxu0 %v318
  %v2202 = vpop.f32.mrb[0].mxu0
  %v2203 = vadd.f32 0.0, %v2202
  %v2204 = vpop.f32.mrb[0].mxu0
  %v2205 = vadd.f32 0.0, %v2204
  %v2206 = vpop.f32.mrb[0].mxu0
  %v2207 = vadd.f32 0.0, %v2206
  %v2208 = vpop.f32.mrb[0].mxu0
  %v2209 = vadd.f32 0.0, %v2208
  %2210 = vmatprep.mubr.bf16.mxu0 %v323
  %2211 = vmatmul.mubr.bf16.gmra.mrb[0].mxu0 %v322
  %v2212 = vpop.f32.mrb[0].mxu0
  %v2213 = vadd.f32 0.0, %v2212
  %v2214 = vpop.f32.mrb[0].mxu0
  %v2215 = vadd.f32 0.0, %v2214
  %v2216 = vpop.f32.mrb[0].mxu0
  %v2217 = vadd.f32 0.0, %v2216
  %v2218 = vpop.f32.mrb[0].mxu0
  %v2219 = vadd.f32 0.0, %v2218
  %2220 = vmatprep.mubr.bf16.mxu0 %v327
  %2221 = vmatmul.mubr.bf16.gmra.mrb[0].mxu0 %v326
  %v2222 = vpop.f32.mrb[0].mxu0
  %v2223 = vadd.f32 0.0, %v2222
  %v2224 = vpop.f32.mrb[0].mxu0
  %v2225 = vadd.f32 0.0, %v2224
  %v2226 = vpop.f32.mrb[0].mxu0
  %v2227 = vadd.f32 0.0, %v2226
  %v2228 = vpop.f32.mrb[0].mxu0
  %v2229 = vadd.f32 0.0, %v2228
  %2230 = vdwg.mxu0
  %2231 = vmatprep.subr.bf16.mxu0 %v1487
  %2232 = vmatpush1.bf16.msra.mxu0 %v1486
  %2233 = vmatprep.subr.bf16.mxu0 %v1495
  %2234 = vmatpush1.bf16.msra.mxu0 %v1494
  %2235 = vmatprep.subr.bf16.mxu0 %v1503
  %2236 = vmatpush1.bf16.msra.mxu0 %v1502
  %2237 = vmatprep.subr.bf16.mxu0 %v1511
  %2238 = vmatpush1.bf16.msra.mxu0 %v1510
  %2239 = vmatprep.subr.bf16.mxu0 %v1519
  %2240 = vmatpush1.bf16.msra.mxu0 %v1518
  %2241 = vmatprep.subr.bf16.mxu0 %v1527
  %2242 = vmatpush1.bf16.msra.mxu0 %v1526
  %2243 = vmatprep.subr.bf16.mxu0 %v1535
  %2244 = vmatpush1.bf16.msra.mxu0 %v1534
  %2245 = vmatprep.subr.bf16.mxu0 %v1543
  %2246 = vmatpush1.bf16.msra.mxu0 %v1542
  %2247 = vmatprep.subr.bf16.mxu0 %v1551
  %2248 = vmatpush1.bf16.msra.mxu0 %v1550
  %2249 = vmatprep.subr.bf16.mxu0 %v1559
  %2250 = vmatpush1.bf16.msra.mxu0 %v1558
  %2251 = vmatprep.subr.bf16.mxu0 %v1567
  %2252 = vmatpush1.bf16.msra.mxu0 %v1566
  %2253 = vmatprep.subr.bf16.mxu0 %v1575
  %2254 = vmatpush1.bf16.msra.mxu0 %v1574
  %2255 = vmatprep.subr.bf16.mxu0 %v1583
  %2256 = vmatpush1.bf16.msra.mxu0 %v1582
  %2257 = vmatprep.subr.bf16.mxu0 %v1591
  %2258 = vmatpush1.bf16.msra.mxu0 %v1590
  %2259 = vmatprep.subr.bf16.mxu0 %v1599
  %2260 = vmatpush1.bf16.msra.mxu0 %v1598
  %2261 = vmatprep.subr.bf16.mxu0 %v1607
  %2262 = vmatpush1.bf16.msra.mxu0 %v1606
  %2263 = vmatprep.mubr.bf16.mxu0 %v317
  %2264 = vmatmul.mubr.bf16.gmra.mrb[0].mxu0 %v316
  %v2265 = vpop.f32.mrb[0].mxu0
  %v2266 = vadd.f32 %v2193, %v2265
  %v2267 = vpop.f32.mrb[0].mxu0
  %v2268 = vadd.f32 %v2195, %v2267
  %v2269 = vpop.f32.mrb[0].mxu0
  %v2270 = vadd.f32 %v2197, %v2269
  %v2271 = vpop.f32.mrb[0].mxu0
  %v2272 = vadd.f32 %v2199, %v2271
  %2273 = vmatprep.mubr.bf16.mxu0 %v321
  %2274 = vmatmul.mubr.bf16.gmra.mrb[0].mxu0 %v320
  %v2275 = vpop.f32.mrb[0].mxu0
  %v2276 = vadd.f32 %v2203, %v2275
  %v2277 = vpop.f32.mrb[0].mxu0
  %v2278 = vadd.f32 %v2205, %v2277
  %v2279 = vpop.f32.mrb[0].mxu0
  %v2280 = vadd.f32 %v2207, %v2279
  %v2281 = vpop.f32.mrb[0].mxu0
  %v2282 = vadd.f32 %v2209, %v2281
  %2283 = vmatprep.mubr.bf16.mxu0 %v325
  %2284 = vmatmul.mubr.bf16.gmra.mrb[0].mxu0 %v324
  %v2285 = vpop.f32.mrb[0].mxu0
  %v2286 = vadd.f32 %v2213, %v2285
  %v2287 = vpop.f32.mrb[0].mxu0
  %v2288 = vadd.f32 %v2215, %v2287
  %v2289 = vpop.f32.mrb[0].mxu0
  %v2290 = vadd.f32 %v2217, %v2289
  %v2291 = vpop.f32.mrb[0].mxu0
  %v2292 = vadd.f32 %v2219, %v2291
  %2293 = vmatprep.mubr.bf16.mxu0 %v329
  %2294 = vmatmul.mubr.bf16.gmra.mrb[0].mxu0 %v328
  %v2295 = vpop.f32.mrb[0].mxu0
  %v2296 = vadd.f32 %v2223, %v2295
  %v2297 = vpop.f32.mrb[0].mxu0
  %v2298 = vadd.f32 %v2225, %v2297
  %v2299 = vpop.f32.mrb[0].mxu0
  %v2300 = vadd.f32 %v2227, %v2299
  %v2301 = vpop.f32.mrb[0].mxu0
  %v2302 = vadd.f32 %v2229, %v2301
  %2303 = vdwg.mxu0
  %2304 = vmatprep.subr.bf16.mxu0 %v1361
  %2305 = vmatpush1.bf16.msra.mxu0 %v1360
  %2306 = vmatprep.subr.bf16.mxu0 %v1369
  %2307 = vmatpush1.bf16.msra.mxu0 %v1368
  %2308 = vmatprep.subr.bf16.mxu0 %v1377
  %2309 = vmatpush1.bf16.msra.mxu0 %v1376
  %2310 = vmatprep.subr.bf16.mxu0 %v1385
  %2311 = vmatpush1.bf16.msra.mxu0 %v1384
  %2312 = vmatprep.subr.bf16.mxu0 %v1393
  %2313 = vmatpush1.bf16.msra.mxu0 %v1392
  %2314 = vmatprep.subr.bf16.mxu0 %v1401
  %2315 = vmatpush1.bf16.msra.mxu0 %v1400
  %2316 = vmatprep.subr.bf16.mxu0 %v1409
  %2317 = vmatpush1.bf16.msra.mxu0 %v1408
  %2318 = vmatprep.subr.bf16.mxu0 %v1417
  %2319 = vmatpush1.bf16.msra.mxu0 %v1416
  %2320 = vmatprep.subr.bf16.mxu0 %v1425
  %2321 = vmatpush1.bf16.msra.mxu0 %v1424
  %2322 = vmatprep.subr.bf16.mxu0 %v1433
  %2323 = vmatpush1.bf16.msra.mxu0 %v1432
  %2324 = vmatprep.subr.bf16.mxu0 %v1441
  %2325 = vmatpush1.bf16.msra.mxu0 %v1440
  %2326 = vmatprep.subr.bf16.mxu0 %v1449
  %2327 = vmatpush1.bf16.msra.mxu0 %v1448
  %2328 = vmatprep.subr.bf16.mxu0 %v1457
  %2329 = vmatpush1.bf16.msra.mxu0 %v1456
  %2330 = vmatprep.subr.bf16.mxu0 %v1465
  %2331 = vmatpush1.bf16.msra.mxu0 %v1464
  %2332 = vmatprep.subr.bf16.mxu0 %v1473
  %2333 = vmatpush1.bf16.msra.mxu0 %v1472
  %2334 = vmatprep.subr.bf16.mxu0 %v1481
  %2335 = vmatpush1.bf16.msra.mxu0 %v1480
  %2336 = vmatprep.mubr.bf16.mxu0 %v315
  %2337 = vmatmul.mubr.bf16.gmra.mrb[0].mxu0 %v314
  %v2338 = vpop.f32.mrb[0].mxu0
  %v2339 = vadd.f32 0.0, %v2338
  %v2340 = vpop.f32.mrb[0].mxu0
  %v2341 = vadd.f32 0.0, %v2340
  %v2342 = vpop.f32.mrb[0].mxu0
  %v2343 = vadd.f32 0.0, %v2342
  %v2344 = vpop.f32.mrb[0].mxu0
  %v2345 = vadd.f32 0.0, %v2344
  %2346 = vmatprep.mubr.bf16.mxu0 %v319
  %2347 = vmatmul.mubr.bf16.gmra.mrb[0].mxu0 %v318
  %v2348 = vpop.f32.mrb[0].mxu0
  %v2349 = vadd.f32 0.0, %v2348
  %v2350 = vpop.f32.mrb[0].mxu0
  %v2351 = vadd.f32 0.0, %v2350
  %v2352 = vpop.f32.mrb[0].mxu0
  %v2353 = vadd.f32 0.0, %v2352
  %v2354 = vpop.f32.mrb[0].mxu0
  %v2355 = vadd.f32 0.0, %v2354
  %2356 = vmatprep.mubr.bf16.mxu0 %v323
  %2357 = vmatmul.mubr.bf16.gmra.mrb[0].mxu0 %v322
  %v2358 = vpop.f32.mrb[0].mxu0
  %v2359 = vadd.f32 0.0, %v2358
  %v2360 = vpop.f32.mrb[0].mxu0
  %v2361 = vadd.f32 0.0, %v2360
  %v2362 = vpop.f32.mrb[0].mxu0
  %v2363 = vadd.f32 0.0, %v2362
  %v2364 = vpop.f32.mrb[0].mxu0
  %v2365 = vadd.f32 0.0, %v2364
  %2366 = vmatprep.mubr.bf16.mxu0 %v327
  %2367 = vmatmul.mubr.bf16.gmra.mrb[0].mxu0 %v326
  %v2368 = vpop.f32.mrb[0].mxu0
  %v2369 = vadd.f32 0.0, %v2368
  %v2370 = vpop.f32.mrb[0].mxu0
  %v2371 = vadd.f32 0.0, %v2370
  %v2372 = vpop.f32.mrb[0].mxu0
  %v2373 = vadd.f32 0.0, %v2372
  %v2374 = vpop.f32.mrb[0].mxu0
  %v2375 = vadd.f32 0.0, %v2374
  %2376 = vdwg.mxu0
  %2377 = vmatprep.subr.bf16.mxu0 %v1489
  %2378 = vmatpush1.bf16.msra.mxu0 %v1488
  %2379 = vmatprep.subr.bf16.mxu0 %v1497
  %2380 = vmatpush1.bf16.msra.mxu0 %v1496
  %2381 = vmatprep.subr.bf16.mxu0 %v1505
  %2382 = vmatpush1.bf16.msra.mxu0 %v1504
  %2383 = vmatprep.subr.bf16.mxu0 %v1513
  %2384 = vmatpush1.bf16.msra.mxu0 %v1512
  %2385 = vmatprep.subr.bf16.mxu0 %v1521
  %2386 = vmatpush1.bf16.msra.mxu0 %v1520
  %2387 = vmatprep.subr.bf16.mxu0 %v1529
  %2388 = vmatpush1.bf16.msra.mxu0 %v1528
  %2389 = vmatprep.subr.bf16.mxu0 %v1537
  %2390 = vmatpush1.bf16.msra.mxu0 %v1536
  %2391 = vmatprep.subr.bf16.mxu0 %v1545
  %2392 = vmatpush1.bf16.msra.mxu0 %v1544
  %2393 = vmatprep.subr.bf16.mxu0 %v1553
  %2394 = vmatpush1.bf16.msra.mxu0 %v1552
  %2395 = vmatprep.subr.bf16.mxu0 %v1561
  %2396 = vmatpush1.bf16.msra.mxu0 %v1560
  %2397 = vmatprep.subr.bf16.mxu0 %v1569
  %2398 = vmatpush1.bf16.msra.mxu0 %v1568
  %2399 = vmatprep.subr.bf16.mxu0 %v1577
  %2400 = vmatpush1.bf16.msra.mxu0 %v1576
  %2401 = vmatprep.subr.bf16.mxu0 %v1585
  %2402 = vmatpush1.bf16.msra.mxu0 %v1584
  %2403 = vmatprep.subr.bf16.mxu0 %v1593
  %2404 = vmatpush1.bf16.msra.mxu0 %v1592
  %2405 = vmatprep.subr.bf16.mxu0 %v1601
  %2406 = vmatpush1.bf16.msra.mxu0 %v1600
  %2407 = vmatprep.subr.bf16.mxu0 %v1609
  %2408 = vmatpush1.bf16.msra.mxu0 %v1608
  %2409 = vmatprep.mubr.bf16.mxu0 %v317
  %2410 = vmatmul.mubr.bf16.gmra.mrb[0].mxu0 %v316
  %v2411 = vpop.f32.mrb[0].mxu0
  %v2412 = vadd.f32 %v2339, %v2411
  %v2413 = vpop.f32.mrb[0].mxu0
  %v2414 = vadd.f32 %v2341, %v2413
  %v2415 = vpop.f32.mrb[0].mxu0
  %v2416 = vadd.f32 %v2343, %v2415
  %v2417 = vpop.f32.mrb[0].mxu0
  %v2418 = vadd.f32 %v2345, %v2417
  %2419 = vmatprep.mubr.bf16.mxu0 %v321
  %2420 = vmatmul.mubr.bf16.gmra.mrb[0].mxu0 %v320
  %v2421 = vpop.f32.mrb[0].mxu0
  %v2422 = vadd.f32 %v2349, %v2421
  %v2423 = vpop.f32.mrb[0].mxu0
  %v2424 = vadd.f32 %v2351, %v2423
  %v2425 = vpop.f32.mrb[0].mxu0
  %v2426 = vadd.f32 %v2353, %v2425
  %v2427 = vpop.f32.mrb[0].mxu0
  %v2428 = vadd.f32 %v2355, %v2427
  %2429 = vmatprep.mubr.bf16.mxu0 %v325
  %2430 = vmatmul.mubr.bf16.gmra.mrb[0].mxu0 %v324
  %v2431 = vpop.f32.mrb[0].mxu0
  %v2432 = vadd.f32 %v2359, %v2431
  %v2433 = vpop.f32.mrb[0].mxu0
  %v2434 = vadd.f32 %v2361, %v2433
  %v2435 = vpop.f32.mrb[0].mxu0
  %v2436 = vadd.f32 %v2363, %v2435
  %v2437 = vpop.f32.mrb[0].mxu0
  %v2438 = vadd.f32 %v2365, %v2437
  %2439 = vmatprep.mubr.bf16.mxu0 %v329
  %2440 = vmatmul.mubr.bf16.gmra.mrb[0].mxu0 %v328
  %v2441 = vpop.f32.mrb[0].mxu0
  %v2442 = vadd.f32 %v2369, %v2441
  %v2443 = vpop.f32.mrb[0].mxu0
  %v2444 = vadd.f32 %v2371, %v2443
  %v2445 = vpop.f32.mrb[0].mxu0
  %v2446 = vadd.f32 %v2373, %v2445
  %v2447 = vpop.f32.mrb[0].mxu0
  %v2448 = vadd.f32 %v2375, %v2447
  %2449 = vdwg.mxu0
  %v2450 = vsub.f32 %v1974, %v2286
  %v2451 = vsub.f32 %v1976, %v2288
  %v2452 = vsub.f32 %v2120, %v2432
  %v2453 = vsub.f32 %v2122, %v2434
  %v2454 = vsub.f32 %v1978, %v2290
  %v2455 = vsub.f32 %v1980, %v2292
  %v2456 = vsub.f32 %v2124, %v2436
  %v2457 = vsub.f32 %v2126, %v2438
  %v2458 = vsub.f32 %v1984, %v2296
  %v2459 = vsub.f32 %v1986, %v2298
  %v2460 = vsub.f32 %v2130, %v2442
  %v2461 = vsub.f32 %v2132, %v2444
  %v2462 = vsub.f32 %v1988, %v2300
  %v2463 = vsub.f32 %v1990, %v2302
  %v2464 = vsub.f32 %v2134, %v2446
  %v2465 = vsub.f32 %v2136, %v2448
  %v2466 = vadd.f32 %v2266, %v1994
  %v2467 = vadd.f32 %v2268, %v1996
  %v2468 = vadd.f32 %v2412, %v2140
  %v2469 = vadd.f32 %v2414, %v2142
  %v2470 = vadd.f32 %v2270, %v1998
  %v2471 = vadd.f32 %v2272, %v2000
  %v2472 = vadd.f32 %v2416, %v2144
  %v2473 = vadd.f32 %v2418, %v2146
  %v2474 = vadd.f32 %v2276, %v2004
  %v2475 = vadd.f32 %v2278, %v2006
  %v2476 = vadd.f32 %v2422, %v2150
  %v2477 = vadd.f32 %v2424, %v2152
  %v2478 = vadd.f32 %v2280, %v2008
  %v2479 = vadd.f32 %v2282, %v2010
  %v2480 = vadd.f32 %v2426, %v2154
  %v2481 = vadd.f32 %v2428, %v2156
  %v2482 = vmul.f32 %v2450, %v2450
  %v2483 = vmul.f32 %v2451, %v2451
  %v2484 = vmul.f32 %v2452, %v2452
  %v2485 = vmul.f32 %v2453, %v2453
  %v2486 = vmul.f32 %v2454, %v2454
  %v2487 = vmul.f32 %v2455, %v2455
  %v2488 = vmul.f32 %v2456, %v2456
  %v2489 = vmul.f32 %v2457, %v2457
  %v2490 = vmul.f32 %v2458, %v2458
  %v2491 = vmul.f32 %v2459, %v2459
  %v2492 = vmul.f32 %v2460, %v2460
  %v2493 = vmul.f32 %v2461, %v2461
  %v2494 = vmul.f32 %v2462, %v2462
  %v2495 = vmul.f32 %v2463, %v2463
  %v2496 = vmul.f32 %v2464, %v2464
  %v2497 = vmul.f32 %v2465, %v2465
  %v2498 = vmul.f32 %v2466, %v2466
  %v2499 = vmul.f32 %v2467, %v2467
  %v2500 = vmul.f32 %v2468, %v2468
  %v2501 = vmul.f32 %v2469, %v2469
  %v2502 = vmul.f32 %v2470, %v2470
  %v2503 = vmul.f32 %v2471, %v2471
  %v2504 = vmul.f32 %v2472, %v2472
  %v2505 = vmul.f32 %v2473, %v2473
  %v2506 = vmul.f32 %v2474, %v2474
  %v2507 = vmul.f32 %v2475, %v2475
  %v2508 = vmul.f32 %v2476, %v2476
  %v2509 = vmul.f32 %v2477, %v2477
  %v2510 = vmul.f32 %v2478, %v2478
  %v2511 = vmul.f32 %v2479, %v2479
  %v2512 = vmul.f32 %v2480, %v2480
  %v2513 = vmul.f32 %v2481, %v2481
  %v2514 = vadd.f32 %v2482, %v2498
  %v2515 = vadd.f32 %v2483, %v2499
  %v2516 = vadd.f32 %v2484, %v2500
  %v2517 = vadd.f32 %v2485, %v2501
  %v2518 = vadd.f32 %v2486, %v2502
  %v2519 = vadd.f32 %v2487, %v2503
  %v2520 = vadd.f32 %v2488, %v2504
  %v2521 = vadd.f32 %v2489, %v2505
  %v2522 = vadd.f32 %v2490, %v2506
  %v2523 = vadd.f32 %v2491, %v2507
  %v2524 = vadd.f32 %v2492, %v2508
  %v2525 = vadd.f32 %v2493, %v2509
  %v2526 = vadd.f32 %v2494, %v2510
  %v2527 = vadd.f32 %v2495, %v2511
  %v2528 = vadd.f32 %v2496, %v2512
  %v2529 = vadd.f32 %v2497, %v2513
  %v2530 = vrsqrt.pop %v2514
  %v2531 = vmul.f32 %v2514, %v2530
  %vm2532 = vcmp.eq.f32.partialorder %v2514, inf
  %v2533 = vsel %vm2532, %v2514, %v2531
  %vm2534 = vcmp.eq.f32.partialorder %v2514, 0.0
  %v2535 = vand.u32 %v2514, 2147483648
  %v2536 = vsel %vm2534, %v2535, %v2533
  %v2537 = vrsqrt.pop %v2515
  %v2538 = vmul.f32 %v2515, %v2537
  %vm2539 = vcmp.eq.f32.partialorder %v2515, inf
  %v2540 = vsel %vm2539, %v2515, %v2538
  %vm2541 = vcmp.eq.f32.partialorder %v2515, 0.0
  %v2542 = vand.u32 %v2515, 2147483648
  %v2543 = vsel %vm2541, %v2542, %v2540
  %v2544 = vrsqrt.pop %v2516
  %v2545 = vmul.f32 %v2516, %v2544
  %vm2546 = vcmp.eq.f32.partialorder %v2516, inf
  %v2547 = vsel %vm2546, %v2516, %v2545
  %vm2548 = vcmp.eq.f32.partialorder %v2516, 0.0
  %v2549 = vand.u32 %v2516, 2147483648
  %v2550 = vsel %vm2548, %v2549, %v2547
  %v2551 = vrsqrt.pop %v2517
  %v2552 = vmul.f32 %v2517, %v2551
  %vm2553 = vcmp.eq.f32.partialorder %v2517, inf
  %v2554 = vsel %vm2553, %v2517, %v2552
  %vm2555 = vcmp.eq.f32.partialorder %v2517, 0.0
  %v2556 = vand.u32 %v2517, 2147483648
  %v2557 = vsel %vm2555, %v2556, %v2554
  %v2558 = vrsqrt.pop %v2518
  %v2559 = vmul.f32 %v2518, %v2558
  %vm2560 = vcmp.eq.f32.partialorder %v2518, inf
  %v2561 = vsel %vm2560, %v2518, %v2559
  %vm2562 = vcmp.eq.f32.partialorder %v2518, 0.0
  %v2563 = vand.u32 %v2518, 2147483648
  %v2564 = vsel %vm2562, %v2563, %v2561
  %v2565 = vrsqrt.pop %v2519
  %v2566 = vmul.f32 %v2519, %v2565
  %vm2567 = vcmp.eq.f32.partialorder %v2519, inf
  %v2568 = vsel %vm2567, %v2519, %v2566
  %vm2569 = vcmp.eq.f32.partialorder %v2519, 0.0
  %v2570 = vand.u32 %v2519, 2147483648
  %v2571 = vsel %vm2569, %v2570, %v2568
  %v2572 = vrsqrt.pop %v2520
  %v2573 = vmul.f32 %v2520, %v2572
  %vm2574 = vcmp.eq.f32.partialorder %v2520, inf
  %v2575 = vsel %vm2574, %v2520, %v2573
  %vm2576 = vcmp.eq.f32.partialorder %v2520, 0.0
  %v2577 = vand.u32 %v2520, 2147483648
  %v2578 = vsel %vm2576, %v2577, %v2575
  %v2579 = vrsqrt.pop %v2521
  %v2580 = vmul.f32 %v2521, %v2579
  %vm2581 = vcmp.eq.f32.partialorder %v2521, inf
  %v2582 = vsel %vm2581, %v2521, %v2580
  %vm2583 = vcmp.eq.f32.partialorder %v2521, 0.0
  %v2584 = vand.u32 %v2521, 2147483648
  %v2585 = vsel %vm2583, %v2584, %v2582
  %v2586 = vrsqrt.pop %v2522
  %v2587 = vmul.f32 %v2522, %v2586
  %vm2588 = vcmp.eq.f32.partialorder %v2522, inf
  %v2589 = vsel %vm2588, %v2522, %v2587
  %vm2590 = vcmp.eq.f32.partialorder %v2522, 0.0
  %v2591 = vand.u32 %v2522, 2147483648
  %v2592 = vsel %vm2590, %v2591, %v2589
  %v2593 = vrsqrt.pop %v2523
  %v2594 = vmul.f32 %v2523, %v2593
  %vm2595 = vcmp.eq.f32.partialorder %v2523, inf
  %v2596 = vsel %vm2595, %v2523, %v2594
  %vm2597 = vcmp.eq.f32.partialorder %v2523, 0.0
  %v2598 = vand.u32 %v2523, 2147483648
  %v2599 = vsel %vm2597, %v2598, %v2596
  %v2600 = vrsqrt.pop %v2524
  %v2601 = vmul.f32 %v2524, %v2600
  %vm2602 = vcmp.eq.f32.partialorder %v2524, inf
  %v2603 = vsel %vm2602, %v2524, %v2601
  %vm2604 = vcmp.eq.f32.partialorder %v2524, 0.0
  %v2605 = vand.u32 %v2524, 2147483648
  %v2606 = vsel %vm2604, %v2605, %v2603
  %v2607 = vrsqrt.pop %v2525
  %v2608 = vmul.f32 %v2525, %v2607
  %vm2609 = vcmp.eq.f32.partialorder %v2525, inf
  %v2610 = vsel %vm2609, %v2525, %v2608
  %vm2611 = vcmp.eq.f32.partialorder %v2525, 0.0
  %v2612 = vand.u32 %v2525, 2147483648
  %v2613 = vsel %vm2611, %v2612, %v2610
  %v2614 = vrsqrt.pop %v2526
  %v2615 = vmul.f32 %v2526, %v2614
  %vm2616 = vcmp.eq.f32.partialorder %v2526, inf
  %v2617 = vsel %vm2616, %v2526, %v2615
  %vm2618 = vcmp.eq.f32.partialorder %v2526, 0.0
  %v2619 = vand.u32 %v2526, 2147483648
  %v2620 = vsel %vm2618, %v2619, %v2617
  %v2621 = vrsqrt.pop %v2527
  %v2622 = vmul.f32 %v2527, %v2621
  %vm2623 = vcmp.eq.f32.partialorder %v2527, inf
  %v2624 = vsel %vm2623, %v2527, %v2622
  %vm2625 = vcmp.eq.f32.partialorder %v2527, 0.0
  %v2626 = vand.u32 %v2527, 2147483648
  %v2627 = vsel %vm2625, %v2626, %v2624
  %v2628 = vrsqrt.pop %v2528
  %v2629 = vmul.f32 %v2528, %v2628
  %vm2630 = vcmp.eq.f32.partialorder %v2528, inf
  %v2631 = vsel %vm2630, %v2528, %v2629
  %vm2632 = vcmp.eq.f32.partialorder %v2528, 0.0
  %v2633 = vand.u32 %v2528, 2147483648
  %v2634 = vsel %vm2632, %v2633, %v2631
  %v2635 = vrsqrt.pop %v2529
  %v2636 = vmul.f32 %v2529, %v2635
  %vm2637 = vcmp.eq.f32.partialorder %v2529, inf
  %v2638 = vsel %vm2637, %v2529, %v2636
  %vm2639 = vcmp.eq.f32.partialorder %v2529, 0.0
  %v2640 = vand.u32 %v2529, 2147483648
  %v2641 = vsel %vm2639, %v2640, %v2638
  %v2642 = vpack.c.bf16 %v2564, %v2536
  %v2643 = vpack.c.bf16 %v2571, %v2543
  %v2644 = vpack.c.bf16 %v2578, %v2550
  %v2645 = vpack.c.bf16 %v2585, %v2557
  %v2646 = vpack.c.bf16 %v2620, %v2592
  %v2647 = vpack.c.bf16 %v2627, %v2599
  %v2648 = vpack.c.bf16 %v2634, %v2606
  %v2649 = vpack.c.bf16 %v2641, %v2613
  %v2650 = vld [vmem:[%s3] sm:$0xf]
  %v2651 = vld [vmem:[%s3 + $0x4] sm:$0xf]
  %v2652 = vld [vmem:[%s3 + $0x8] sm:$0xf]
  %v2653 = vld [vmem:[%s3 + $0xc] sm:$0xf]
  %v2654 = vld [vmem:[%s3 + $0x10] sm:$0xf]
  %v2655 = vld [vmem:[%s3 + $0x14] sm:$0xf]
  %v2656 = vld [vmem:[%s3 + $0x18] sm:$0xf]
  %v2657 = vld [vmem:[%s3 + $0x1c] sm:$0xf]
  %v2658 = vld [vmem:[%s3 + $0x20] sm:$0xf]
  %v2659 = vld [vmem:[%s3 + $0x24] sm:$0xf]
  %v2660 = vld [vmem:[%s3 + $0x28] sm:$0xf]
  %v2661 = vld [vmem:[%s3 + $0x2c] sm:$0xf]
  %v2662 = vld [vmem:[%s3 + $0x30] sm:$0xf]
  %v2663 = vld [vmem:[%s3 + $0x34] sm:$0xf]
  %v2664 = vld [vmem:[%s3 + $0x38] sm:$0xf]
  %v2665 = vld [vmem:[%s3 + $0x3c] sm:$0xf]
  %v2666 = vld [vmem:[%s3 + $0x40] sm:$0xf]
  %v2667 = vld [vmem:[%s3 + $0x44] sm:$0xf]
  %v2668 = vld [vmem:[%s3 + $0x48] sm:$0xf]
  %v2669 = vld [vmem:[%s3 + $0x4c] sm:$0xf]
  %v2670 = vld [vmem:[%s3 + $0x50] sm:$0xf]
  %v2671 = vld [vmem:[%s3 + $0x54] sm:$0xf]
  %v2672 = vld [vmem:[%s3 + $0x58] sm:$0xf]
  %v2673 = vld [vmem:[%s3 + $0x5c] sm:$0xf]
  %v2674 = vld [vmem:[%s3 + $0x60] sm:$0xf]
  %v2675 = vld [vmem:[%s3 + $0x64] sm:$0xf]
  %v2676 = vld [vmem:[%s3 + $0x68] sm:$0xf]
  %v2677 = vld [vmem:[%s3 + $0x6c] sm:$0xf]
  %v2678 = vld [vmem:[%s3 + $0x70] sm:$0xf]
  %v2679 = vld [vmem:[%s3 + $0x74] sm:$0xf]
  %v2680 = vld [vmem:[%s3 + $0x78] sm:$0xf]
  %v2681 = vld [vmem:[%s3 + $0x7c] sm:$0xf]
  %v2682 = vld [vmem:[%s3 + $0x80] sm:$0xf]
  %v2683 = vld [vmem:[%s3 + $0x84] sm:$0xf]
  %v2684 = vld [vmem:[%s3 + $0x88] sm:$0xf]
  %v2685 = vld [vmem:[%s3 + $0x8c] sm:$0xf]
  %v2686 = vld [vmem:[%s3 + $0x90] sm:$0xf]
  %v2687 = vld [vmem:[%s3 + $0x94] sm:$0xf]
  %v2688 = vld [vmem:[%s3 + $0x98] sm:$0xf]
  %v2689 = vld [vmem:[%s3 + $0x9c] sm:$0xf]
  %v2690 = vld [vmem:[%s3 + $0xa0] sm:$0xf]
  %v2691 = vld [vmem:[%s3 + $0xa4] sm:$0xf]
  %v2692 = vld [vmem:[%s3 + $0xa8] sm:$0xf]
  %v2693 = vld [vmem:[%s3 + $0xac] sm:$0xf]
  %v2694 = vld [vmem:[%s3 + $0xb0] sm:$0xf]
  %v2695 = vld [vmem:[%s3 + $0xb4] sm:$0xf]
  %v2696 = vld [vmem:[%s3 + $0xb8] sm:$0xf]
  %v2697 = vld [vmem:[%s3 + $0xbc] sm:$0xf]
  %v2698 = vld [vmem:[%s3 + $0xc0] sm:$0xf]
  %v2699 = vld [vmem:[%s3 + $0xc4] sm:$0xf]
  %v2700 = vld [vmem:[%s3 + $0xc8] sm:$0xf]
  %v2701 = vld [vmem:[%s3 + $0xcc] sm:$0xf]
  %v2702 = vld [vmem:[%s3 + $0xd0] sm:$0xf]
  %v2703 = vld [vmem:[%s3 + $0xd4] sm:$0xf]
  %v2704 = vld [vmem:[%s3 + $0xd8] sm:$0xf]
  %v2705 = vld [vmem:[%s3 + $0xdc] sm:$0xf]
  %v2706 = vld [vmem:[%s3 + $0xe0] sm:$0xf]
  %v2707 = vld [vmem:[%s3 + $0xe4] sm:$0xf]
  %v2708 = vld [vmem:[%s3 + $0xe8] sm:$0xf]
  %v2709 = vld [vmem:[%s3 + $0xec] sm:$0xf]
  %v2710 = vld [vmem:[%s3 + $0xf0] sm:$0xf]
  %v2711 = vld [vmem:[%s3 + $0xf4] sm:$0xf]
  %v2712 = vld [vmem:[%s3 + $0xf8] sm:$0xf]
  %v2713 = vld [vmem:[%s3 + $0xfc] sm:$0xf]
  %v2778 = vunpack.c.l.b16 %v2650
  %v2779 = vunpack.c.l.b16 %v2651
  %v2780 = vunpack.c.l.b16 %v2652
  %v2781 = vunpack.c.l.b16 %v2653
  %v2782 = vunpack.c.l.b16 %v2654
  %v2783 = vunpack.c.l.b16 %v2655
  %v2784 = vunpack.c.l.b16 %v2656
  %v2785 = vunpack.c.l.b16 %v2657
  %v2786 = vunpack.c.l.b16 %v2658
  %v2787 = vunpack.c.l.b16 %v2659
  %v2788 = vunpack.c.l.b16 %v2660
  %v2789 = vunpack.c.l.b16 %v2661
  %v2790 = vunpack.c.l.b16 %v2662
  %v2791 = vunpack.c.l.b16 %v2663
  %v2792 = vunpack.c.l.b16 %v2664
  %v2793 = vunpack.c.l.b16 %v2665
  %v2794 = vunpack.c.l.b16 %v2666
  %v2795 = vunpack.c.l.b16 %v2667
  %v2796 = vunpack.c.l.b16 %v2668
  %v2797 = vunpack.c.l.b16 %v2669
  %v2798 = vunpack.c.l.b16 %v2670
  %v2799 = vunpack.c.l.b16 %v2671
  %v2800 = vunpack.c.l.b16 %v2672
  %v2801 = vunpack.c.l.b16 %v2673
  %v2802 = vunpack.c.l.b16 %v2674
  %v2803 = vunpack.c.l.b16 %v2675
  %v2804 = vunpack.c.l.b16 %v2676
  %v2805 = vunpack.c.l.b16 %v2677
  %v2806 = vunpack.c.l.b16 %v2678
  %v2807 = vunpack.c.l.b16 %v2679
  %v2808 = vunpack.c.l.b16 %v2680
  %v2809 = vunpack.c.l.b16 %v2681
  %v2810 = vunpack.c.l.b16 %v2682
  %v2811 = vunpack.c.l.b16 %v2683
  %v2812 = vunpack.c.l.b16 %v2684
  %v2813 = vunpack.c.l.b16 %v2685
  %v2814 = vunpack.c.l.b16 %v2686
  %v2815 = vunpack.c.l.b16 %v2687
  %v2816 = vunpack.c.l.b16 %v2688
  %v2817 = vunpack.c.l.b16 %v2689
  %v2818 = vunpack.c.l.b16 %v2690
  %v2819 = vunpack.c.l.b16 %v2691
  %v2820 = vunpack.c.l.b16 %v2692
  %v2821 = vunpack.c.l.b16 %v2693
  %v2822 = vunpack.c.l.b16 %v2694
  %v2823 = vunpack.c.l.b16 %v2695
  %v2824 = vunpack.c.l.b16 %v2696
  %v2825 = vunpack.c.l.b16 %v2697
  %v2826 = vunpack.c.l.b16 %v2698
  %v2827 = vunpack.c.l.b16 %v2699
  %v2828 = vunpack.c.l.b16 %v2700
  %v2829 = vunpack.c.l.b16 %v2701
  %v2830 = vunpack.c.l.b16 %v2702
  %v2831 = vunpack.c.l.b16 %v2703
  %v2832 = vunpack.c.l.b16 %v2704
  %v2833 = vunpack.c.l.b16 %v2705
  %v2834 = vunpack.c.l.b16 %v2706
  %v2835 = vunpack.c.l.b16 %v2707
  %v2836 = vunpack.c.l.b16 %v2708
  %v2837 = vunpack.c.l.b16 %v2709
  %v2838 = vunpack.c.l.b16 %v2710
  %v2839 = vunpack.c.l.b16 %v2711
  %v2840 = vunpack.c.l.b16 %v2712
  %v2841 = vunpack.c.l.b16 %v2713
  %v2842 = vpack.c.b16 %v2779, %v2778
  %v2843 = vpack.c.b16 %v2781, %v2780
  %v2844 = vpack.c.b16 %v2783, %v2782
  %v2845 = vpack.c.b16 %v2785, %v2784
  %v2846 = vpack.c.b16 %v2787, %v2786
  %v2847 = vpack.c.b16 %v2789, %v2788
  %v2848 = vpack.c.b16 %v2791, %v2790
  %v2849 = vpack.c.b16 %v2793, %v2792
  %v2850 = vpack.c.b16 %v2795, %v2794
  %v2851 = vpack.c.b16 %v2797, %v2796
  %v2852 = vpack.c.b16 %v2799, %v2798
  %v2853 = vpack.c.b16 %v2801, %v2800
  %v2854 = vpack.c.b16 %v2803, %v2802
  %v2855 = vpack.c.b16 %v2805, %v2804
  %v2856 = vpack.c.b16 %v2807, %v2806
  %v2857 = vpack.c.b16 %v2809, %v2808
  %v2858 = vpack.c.b16 %v2811, %v2810
  %v2859 = vpack.c.b16 %v2813, %v2812
  %v2860 = vpack.c.b16 %v2815, %v2814
  %v2861 = vpack.c.b16 %v2817, %v2816
  %v2862 = vpack.c.b16 %v2819, %v2818
  %v2863 = vpack.c.b16 %v2821, %v2820
  %v2864 = vpack.c.b16 %v2823, %v2822
  %v2865 = vpack.c.b16 %v2825, %v2824
  %v2866 = vpack.c.b16 %v2827, %v2826
  %v2867 = vpack.c.b16 %v2829, %v2828
  %v2868 = vpack.c.b16 %v2831, %v2830
  %v2869 = vpack.c.b16 %v2833, %v2832
  %v2870 = vpack.c.b16 %v2835, %v2834
  %v2871 = vpack.c.b16 %v2837, %v2836
  %v2872 = vpack.c.b16 %v2839, %v2838
  %v2873 = vpack.c.b16 %v2841, %v2840
  %2906 = vmatprep.subr.bf16.mxu0 0
  %2907 = vmatpush1.bf16.msra.mxu0 %v2842
  %2908 = vmatprep.subr.bf16.mxu0 0
  %2909 = vmatpush1.bf16.msra.mxu0 %v2843
  %2910 = vmatprep.subr.bf16.mxu0 0
  %2911 = vmatpush1.bf16.msra.mxu0 %v2844
  %2912 = vmatprep.subr.bf16.mxu0 0
  %2913 = vmatpush1.bf16.msra.mxu0 %v2845
  %2914 = vmatprep.subr.bf16.mxu0 0
  %2915 = vmatpush1.bf16.msra.mxu0 %v2846
  %2916 = vmatprep.subr.bf16.mxu0 0
  %2917 = vmatpush1.bf16.msra.mxu0 %v2847
  %2918 = vmatprep.subr.bf16.mxu0 0
  %2919 = vmatpush1.bf16.msra.mxu0 %v2848
  %2920 = vmatprep.subr.bf16.mxu0 0
  %2921 = vmatpush1.bf16.msra.mxu0 %v2849
  %2922 = vmatprep.subr.bf16.mxu0 0
  %2923 = vmatpush1.bf16.msra.mxu0 %v2850
  %2924 = vmatprep.subr.bf16.mxu0 0
  %2925 = vmatpush1.bf16.msra.mxu0 %v2851
  %2926 = vmatprep.subr.bf16.mxu0 0
  %2927 = vmatpush1.bf16.msra.mxu0 %v2852
  %2928 = vmatprep.subr.bf16.mxu0 0
  %2929 = vmatpush1.bf16.msra.mxu0 %v2853
  %2930 = vmatprep.subr.bf16.mxu0 0
  %2931 = vmatpush1.bf16.msra.mxu0 %v2854
  %2932 = vmatprep.subr.bf16.mxu0 0
  %2933 = vmatpush1.bf16.msra.mxu0 %v2855
  %2934 = vmatprep.subr.bf16.mxu0 0
  %2935 = vmatpush1.bf16.msra.mxu0 %v2856
  %2936 = vmatprep.subr.bf16.mxu0 0
  %2937 = vmatpush1.bf16.msra.mxu0 %v2857
  %2938 = vmatprep.mubr.bf16.mxu0 %v2643
  %2939 = vmatmul.mubr.bf16.gmra.mrb[0].mxu0 %v2642
  %v2940 = vpop.f32.mrb[0].mxu0
  %v2941 = vadd.f32 0.0, %v2940
  %v2942 = vpop.f32.mrb[0].mxu0
  %v2943 = vpop.f32.mrb[0].mxu0
  %v2944 = vadd.f32 0.0, %v2943
  %v2945 = vpop.f32.mrb[0].mxu0
  %2946 = vmatprep.mubr.bf16.mxu0 %v2647
  %2947 = vmatmul.mubr.bf16.gmra.mrb[0].mxu0 %v2646
  %v2948 = vpop.f32.mrb[0].mxu0
  %v2949 = vadd.f32 0.0, %v2948
  %v2950 = vpop.f32.mrb[0].mxu0
  %v2951 = vpop.f32.mrb[0].mxu0
  %v2952 = vadd.f32 0.0, %v2951
  %v2953 = vpop.f32.mrb[0].mxu0
  %2954 = vdwg.mxu0
  %2955 = vmatprep.subr.bf16.mxu0 0
  %2956 = vmatpush1.bf16.msra.mxu0 %v2858
  %2957 = vmatprep.subr.bf16.mxu0 0
  %2958 = vmatpush1.bf16.msra.mxu0 %v2859
  %2959 = vmatprep.subr.bf16.mxu0 0
  %2960 = vmatpush1.bf16.msra.mxu0 %v2860
  %2961 = vmatprep.subr.bf16.mxu0 0
  %2962 = vmatpush1.bf16.msra.mxu0 %v2861
  %2963 = vmatprep.subr.bf16.mxu0 0
  %2964 = vmatpush1.bf16.msra.mxu0 %v2862
  %2965 = vmatprep.subr.bf16.mxu0 0
  %2966 = vmatpush1.bf16.msra.mxu0 %v2863
  %2967 = vmatprep.subr.bf16.mxu0 0
  %2968 = vmatpush1.bf16.msra.mxu0 %v2864
  %2969 = vmatprep.subr.bf16.mxu0 0
  %2970 = vmatpush1.bf16.msra.mxu0 %v2865
  %2971 = vmatprep.subr.bf16.mxu0 0
  %2972 = vmatpush1.bf16.msra.mxu0 %v2866
  %2973 = vmatprep.subr.bf16.mxu0 0
  %2974 = vmatpush1.bf16.msra.mxu0 %v2867
  %2975 = vmatprep.subr.bf16.mxu0 0
  %2976 = vmatpush1.bf16.msra.mxu0 %v2868
  %2977 = vmatprep.subr.bf16.mxu0 0
  %2978 = vmatpush1.bf16.msra.mxu0 %v2869
  %2979 = vmatprep.subr.bf16.mxu0 0
  %2980 = vmatpush1.bf16.msra.mxu0 %v2870
  %2981 = vmatprep.subr.bf16.mxu0 0
  %2982 = vmatpush1.bf16.msra.mxu0 %v2871
  %2983 = vmatprep.subr.bf16.mxu0 0
  %2984 = vmatpush1.bf16.msra.mxu0 %v2872
  %2985 = vmatprep.subr.bf16.mxu0 0
  %2986 = vmatpush1.bf16.msra.mxu0 %v2873
  %2987 = vmatprep.mubr.bf16.mxu0 %v2645
  %2988 = vmatmul.mubr.bf16.gmra.mrb[0].mxu0 %v2644
  %v2989 = vpop.f32.mrb[0].mxu0
  %v2990 = vadd.f32 %v2941, %v2989
  %v2991 = vpop.f32.mrb[0].mxu0
  %v2992 = vpop.f32.mrb[0].mxu0
  %v2993 = vadd.f32 %v2944, %v2992
  %v2994 = vpop.f32.mrb[0].mxu0
  %2995 = vmatprep.mubr.bf16.mxu0 %v2649
  %2996 = vmatmul.mubr.bf16.gmra.mrb[0].mxu0 %v2648
  %v2997 = vpop.f32.mrb[0].mxu0
  %v2998 = vadd.f32 %v2949, %v2997
  %v2999 = vpop.f32.mrb[0].mxu0
  %v3000 = vpop.f32.mrb[0].mxu0
  %v3001 = vadd.f32 %v2952, %v3000
  %v3002 = vpop.f32.mrb[0].mxu0
  %3003 = vdwg.mxu0
  %v3004 = vand.u32 2147483647, %v2990
  %v3005 = vand.u32 2147483647, %v2993
  %v3006 = vand.u32 2147483647, %v2998
  %v3007 = vand.u32 2147483647, %v3001
  %3008 = vst [vmem:[%s5] sm:$0xff] %v3004
  %3009 = vst [vmem:[%s5 + $0x8] sm:$0xff] %v3005
  %3010 = vst [vmem:[%s5 + $0x10] sm:$0xff] %v3006
  %3011 = vst [vmem:[%s5 + $0x18] sm:$0xff] %v3007
  %v3012 = vld [vmem:[%s4] sm:$0xff]
  %v3013 = vld [vmem:[%s4 + $0x8] sm:$0xff]
  %v3014 = vld [vmem:[%s4 + $0x10] sm:$0xff]
  %v3015 = vld [vmem:[%s4 + $0x18] sm:$0xff]
  %v3016 = vmul.f32 %v3004, %v3012
  %v3017 = vmul.f32 %v3005, %v3013
  %v3018 = vmul.f32 %v3006, %v3014
  %v3019 = vmul.f32 %v3007, %v3015
  %v3020 = vadd.f32 %v3016, %v3017
  %v3021 = vadd.f32 %v3020, %v3018
  %v3022 = vadd.f32 %v3021, %v3019
  %3023 = vadd.xlane.f32.xlu0 %v3022
  %v3024 = vpop.xlane.xlu0 %3023
  %v3025 = vrot.slane %v3024, 4
  %v3026 = vadd.f32 %v3024, %v3025
  %v3027 = vrot.slane %v3026, 2
  %v3028 = vadd.f32 %v3026, %v3027
  %v3029 = vrot.slane %v3028, 1
  %v3030 = vadd.f32 %v3028, %v3029
  %s3031 = vtos %v3030
  %v3032 = vstv %s3031
  %3033 = vst [vmem:[%s6] sm:$0xff] %v3032
  // Predicated region
  $region22: #{cnn_forward.1} parent=0 // pred_check
    _
  $region23: #{cnn_forward.1} parent=0 // pred_check_branch
    %3035 = sbr.rel (0) target = $region25
  $region24: #{cnn_forward.1} parent=0 // pred_region
    _
  $region25: #{cnn_forward.1} parent=0 // pred_fallthru
    _
  // Predicated region
  $region26: #{cnn_forward.1} parent=0 // pred_check
    _
  $region27: #{cnn_forward.1} parent=0 // pred_check_branch
    %3037 = sbr.rel (0) target = $region29
  $region28: #{cnn_forward.1} parent=0 // pred_region
    _
  $region29: #{cnn_forward.1} parent=0 // pred_fallthru
    _
  // Predicated region
  $region30: #{cnn_forward.1} parent=0 // pred_check
    _
  $region31: #{cnn_forward.1} parent=0 // pred_check_branch
    %3039 = sbr.rel (0) target = $region33
  $region32: #{cnn_forward.1} parent=0 // pred_region
    _
  $region33: #{cnn_forward.1} parent=0 // pred_fallthru
    _
  // Predicated region
  $region34: #{cnn_forward.1} parent=0 // pred_check
    _
  $region35: #{cnn_forward.1} parent=0 // pred_check_branch
    %3041 = sbr.rel (0) target = $region37
  $region36: #{cnn_forward.1} parent=0 // pred_region
    _
  $region37: #{cnn_forward.1} parent=0 // pred_fallthru
    _

</llo_original>
